<compile_context>
chip_gen: v6e
topology: v6e:2x2x1
jax: 0.10.0
libtpu: 0.0.40
codegen_flags: <defaults>
</compile_context>

<pallas_src>
import jax
import jax.numpy as jnp
from jax.experimental import pallas as pl
from jax.experimental.pallas import tpu as pltpu


def _round_up(n, m):
    return ((n + m - 1) // m) * m


def _mlp_kernel(x_ref,
                w1_ref, s1_ref,
                w2_ref, s2_ref,
                w3_ref, b3_ref,
                o_ref):
    """One batch tile of the classifier head. Weights are VMEM-resident."""
    x = x_ref[...]                                               # [TB, 1536] bf16

    # Linear(1536->512) + folded BN + ReLU   (Dropout(0.5) = identity in eval)
    h1 = jnp.dot(x, w1_ref[...], preferred_element_type=jnp.float32)
    h1 = jnp.maximum(h1 + s1_ref[...], 0.0)                     # f32

    # Linear(512->256) + folded BN + ReLU    (Dropout(0.3) = identity in eval)
    h2 = jnp.dot(h1.astype(jnp.bfloat16), w2_ref[...],
                 preferred_element_type=jnp.float32)
    h2 = jnp.maximum(h2 + s2_ref[...], 0.0)                     # f32

    # Linear(256->num_classes), padded to 128 lanes for a lane-dense store.
    out = jnp.dot(h2.astype(jnp.bfloat16), w3_ref[...],
                  preferred_element_type=jnp.float32)
    o_ref[...] = out + b3_ref[...]                              # [TB, 128] f32


def pneumonia_head_forward(x, params, *, block_b=512):
    """x: [B, 1536] float32. params: kernel params from make_params()."""
    B, F = x.shape
    num_classes = params["num_classes"]
    c_pad = params["w3"].shape[1]                                # 128
    h1 = params["w1"].shape[1]                                   # 512
    h2 = params["w2"].shape[1]                                   # 256

    # --- Batch tiling -------------------------------------------------------
    b8 = _round_up(B, 8)
    if b8 <= 256:
        tb = b8                 # small batch: one grid step (weights dominate)
    else:
        # 256-aligned rows (full 2x256x256 MXU occupancy on v6e/v7x) and at
        # least two grid steps so "parallel" can shard across v7x's 2 cores.
        tb = min(block_b, _round_up((b8 + 1) // 2, 256))
    b_pad = _round_up(B, tb)
    if b_pad != B:
        x = jnp.pad(x, ((0, b_pad - B), (0, 0)))
    x = x.astype(jnp.bfloat16)   # bf16 activations: native MXU, half the DMA
    grid = (b_pad // tb,)

    def resident(shape):
        # Constant block index + single buffer: fetched once, stays in VMEM
        # for every grid step (no second buffer, no re-issued DMA).
        return pl.BlockSpec(shape, lambda i: (0, 0),
                            pipeline_mode=pl.Buffered(1))

    out = pl.pallas_call(
        _mlp_kernel,
        out_shape=jax.ShapeDtypeStruct((b_pad, c_pad), jnp.float32),
        grid=grid,
        in_specs=[
            pl.BlockSpec((tb, F), lambda i: (i, 0)),             # x tile (bf16)
            resident((F, h1)), resident((1, h1)),                # w1', shift1'
            resident((h1, h2)), resident((1, h2)),               # w2', shift2'
            resident((h2, c_pad)), resident((1, c_pad)),         # w3 (padded), b3
        ],
        out_specs=pl.BlockSpec((tb, c_pad), lambda i: (i, 0)),
        compiler_params=pltpu.CompilerParams(
            dimension_semantics=("parallel",),
            vmem_limit_bytes=32 << 20,
        ),
    )(
        x,
        params["w1"], params["shift1"],
        params["w2"], params["shift2"],
        params["w3"], params["b3"],
    )
    return out[:B, :num_classes]


def make_params(key, input_features=1536, num_classes=4, eps=1e-5):
    """Synthesize PyTorch-shaped f32 parameters; return (kernel, raw) params."""
    ks = jax.random.split(key, 14)

    def linear(kw, kb, fan_in, fan_out):
        # PyTorch Linear weight is (out, in); we store its transpose (in, out).
        bound = 1.0 / (fan_in ** 0.5)
        w = jax.random.uniform(kw, (fan_in, fan_out), jnp.float32, -bound, bound)
        b = jax.random.uniform(kb, (1, fan_out), jnp.float32, -bound, bound)
        return w, b

    def batchnorm(kg, kb, km, kv, n):
        gamma = 1.0 + 0.1 * jax.random.normal(kg, (1, n), jnp.float32)
        beta = 0.1 * jax.random.normal(kb, (1, n), jnp.float32)
        mean = 0.1 * jax.random.normal(km, (1, n), jnp.float32)
        var = jnp.abs(1.0 + 0.1 * jax.random.normal(kv, (1, n), jnp.float32))
        return gamma, beta, mean, var

    w1_t, b1 = linear(ks[0], ks[1], input_features, 512)
    g1, be1, m1, v1 = batchnorm(ks[2], ks[3], ks[4], ks[5], 512)
    w2_t, b2 = linear(ks[6], ks[7], 512, 256)
    g2, be2, m2, v2 = batchnorm(ks[8], ks[9], ks[10], ks[11], 256)
    w3_t, b3 = linear(ks[12], ks[13], 256, num_classes)

    raw = dict(w1_t=w1_t, b1=b1, bn1=(g1, be1, m1, v1),
               w2_t=w2_t, b2=b2, bn2=(g2, be2, m2, v2),
               w3_t=w3_t, b3=b3, eps=eps)

    # --- Fold Linear bias + eval-mode BatchNorm into the weights ------------
    #   BN(Wx + b) = x @ (W * s) + (b * s + t),  s = g/sqrt(var+eps), t = beta - mean*s
    s1 = g1 / jnp.sqrt(v1 + eps)
    t1 = be1 - m1 * s1
    s2 = g2 / jnp.sqrt(v2 + eps)
    t2 = be2 - m2 * s2
    w1_folded = w1_t * s1
    shift1 = b1 * s1 + t1
    w2_folded = w2_t * s2
    shift2 = b2 * s2 + t2

    # --- Pad the final layer to 128 output lanes (lane-dense output block) --
    c_pad = max(128, _round_up(num_classes, 128))
    w3_padded = jnp.zeros((256, c_pad), jnp.float32).at[:, :num_classes].set(w3_t)
    b3_padded = jnp.zeros((1, c_pad), jnp.float32).at[:, :num_classes].set(b3)

    # --- Ship weight matrices as bf16 (native MXU dtype); shifts stay f32 ---
    kernel_params = dict(
        w1=w1_folded.astype(jnp.bfloat16), shift1=shift1,
        w2=w2_folded.astype(jnp.bfloat16), shift2=shift2,
        w3=w3_padded.astype(jnp.bfloat16), b3=b3_padded,
        num_classes=num_classes,
    )
    return kernel_params, raw


def reference_forward_f32(x, raw):
    """True f32 module math (unfolded Linear + eval-mode BatchNorm + ReLU)."""
    eps = raw["eps"]

    def bn(h, p):
        g, b, m, v = p
        return (h - m) / jnp.sqrt(v + eps) * g + b

    h = jnp.maximum(bn(x @ raw["w1_t"] + raw["b1"], raw["bn1"]), 0.0)
    h = jnp.maximum(bn(h @ raw["w2_t"] + raw["b2"], raw["bn2"]), 0.0)
    return h @ raw["w3_t"] + raw["b3"]


if __name__ == "__main__":
    key = jax.random.PRNGKey(0)
    k_x, k_p = jax.random.split(key)

    B, F, C = 8, 1536, 4                      # input_features fixed by the module
    x = jax.random.normal(k_x, (B, F), jnp.float32)
    kernel_params, raw_params = make_params(k_p, input_features=F, num_classes=C)

    out = pneumonia_head_forward(x, kernel_params)
    out = jax.block_until_ready(out)

    ref = reference_forward_f32(x, raw_params)
    assert out.shape == (B, C) and out.dtype == jnp.float32
    # bf16 weights + bf16 matmul operands vs. the exact f32 module output:
    # expected error is O(1e-3); 3e-2 gives a wide safety margin.
    assert jnp.allclose(out, ref, atol=3e-2, rtol=3e-2), \
        float(jnp.max(jnp.abs(out - ref)))
    print("KERNEL_OK")
</pallas_src>

<mosaic_0001>
module attributes {stable_mosaic.version = 11 : i64} {
  func.func @_mlp_kernel(%arg0: i32, %arg1: memref<8x1536xbf16, #tpu.memory_space<vmem>>, %arg2: memref<1536x512xbf16, #tpu.memory_space<vmem>>, %arg3: memref<1x512xf32, #tpu.memory_space<vmem>>, %arg4: memref<512x256xbf16, #tpu.memory_space<vmem>>, %arg5: memref<1x256xf32, #tpu.memory_space<vmem>>, %arg6: memref<256x128xbf16, #tpu.memory_space<vmem>>, %arg7: memref<1x128xf32, #tpu.memory_space<vmem>>, %arg8: memref<8x128xf32, #tpu.memory_space<vmem>>) attributes {dimension_semantics = [#tpu.dimension_semantics<parallel>], iteration_bounds = array<i64: 1>, scalar_prefetch = 0 : i64, scratch_operands = 0 : i64, tpu.core_type = #tpu.core_type<tc>, window_params = [{transform_indices = @transform_0, window_bounds = array<i64: 8, 1536>}, {pipeline_mode = #tpu.pipeline_mode<synchronous>, transform_indices = @transform_1, window_bounds = array<i64: 1536, 512>}, {pipeline_mode = #tpu.pipeline_mode<synchronous>, transform_indices = @transform_2, window_bounds = array<i64: 1, 512>}, {pipeline_mode = #tpu.pipeline_mode<synchronous>, transform_indices = @transform_3, window_bounds = array<i64: 512, 256>}, {pipeline_mode = #tpu.pipeline_mode<synchronous>, transform_indices = @transform_4, window_bounds = array<i64: 1, 256>}, {pipeline_mode = #tpu.pipeline_mode<synchronous>, transform_indices = @transform_5, window_bounds = array<i64: 256, 128>}, {pipeline_mode = #tpu.pipeline_mode<synchronous>, transform_indices = @transform_6, window_bounds = array<i64: 1, 128>}, {transform_indices = @transform_7, window_bounds = array<i64: 8, 128>}]} {
    %c0 = arith.constant 0 : index
    %c0_0 = arith.constant 0 : index
    %0 = vector.load %arg1[%c0, %c0_0] : memref<8x1536xbf16, #tpu.memory_space<vmem>>, vector<8x1536xbf16>
    %c0_1 = arith.constant 0 : index
    %c0_2 = arith.constant 0 : index
    %1 = vector.load %arg2[%c0_1, %c0_2] : memref<1536x512xbf16, #tpu.memory_space<vmem>>, vector<1536x512xbf16>
    %cst = arith.constant dense<0.000000e+00> : vector<8x512xf32>
    %2 = tpu.matmul %0, %1, %cst {dimension_numbers = #tpu.dot_dimension_numbers<[1], [0], [0], [1], [0, 0, 1, 1], [], []>} : vector<8x1536xbf16>, vector<1536x512xbf16>, vector<8x512xf32> -> vector<8x512xf32>
    %c0_3 = arith.constant 0 : index
    %c0_4 = arith.constant 0 : index
    %3 = vector.load %arg3[%c0_3, %c0_4] : memref<1x512xf32, #tpu.memory_space<vmem>>, vector<1x512xf32>
    %4 = vector.broadcast %3 : vector<1x512xf32> to vector<8x512xf32>
    %5 = arith.addf %2, %4 : vector<8x512xf32>
    %cst_5 = arith.constant 0.000000e+00 : f32
    %6 = vector.broadcast %cst_5 : f32 to vector<8x512xf32>
    %7 = arith.maximumf %5, %6 : vector<8x512xf32>
    %8 = arith.truncf %7 : vector<8x512xf32> to vector<8x512xbf16>
    %c0_6 = arith.constant 0 : index
    %c0_7 = arith.constant 0 : index
    %9 = vector.load %arg4[%c0_6, %c0_7] : memref<512x256xbf16, #tpu.memory_space<vmem>>, vector<512x256xbf16>
    %cst_8 = arith.constant dense<0.000000e+00> : vector<8x256xf32>
    %10 = tpu.matmul %8, %9, %cst_8 {dimension_numbers = #tpu.dot_dimension_numbers<[1], [0], [0], [1], [0, 0, 1, 1], [], []>} : vector<8x512xbf16>, vector<512x256xbf16>, vector<8x256xf32> -> vector<8x256xf32>
    %c0_9 = arith.constant 0 : index
    %c0_10 = arith.constant 0 : index
    %11 = vector.load %arg5[%c0_9, %c0_10] : memref<1x256xf32, #tpu.memory_space<vmem>>, vector<1x256xf32>
    %12 = vector.broadcast %11 : vector<1x256xf32> to vector<8x256xf32>
    %13 = arith.addf %10, %12 : vector<8x256xf32>
    %cst_11 = arith.constant 0.000000e+00 : f32
    %14 = vector.broadcast %cst_11 : f32 to vector<8x256xf32>
    %15 = arith.maximumf %13, %14 : vector<8x256xf32>
    %16 = arith.truncf %15 : vector<8x256xf32> to vector<8x256xbf16>
    %c0_12 = arith.constant 0 : index
    %c0_13 = arith.constant 0 : index
    %17 = vector.load %arg6[%c0_12, %c0_13] : memref<256x128xbf16, #tpu.memory_space<vmem>>, vector<256x128xbf16>
    %cst_14 = arith.constant dense<0.000000e+00> : vector<8x128xf32>
    %18 = tpu.matmul %16, %17, %cst_14 {dimension_numbers = #tpu.dot_dimension_numbers<[1], [0], [0], [1], [0, 0, 1, 1], [], []>} : vector<8x256xbf16>, vector<256x128xbf16>, vector<8x128xf32> -> vector<8x128xf32>
    %c0_15 = arith.constant 0 : index
    %c0_16 = arith.constant 0 : index
    %19 = vector.load %arg7[%c0_15, %c0_16] : memref<1x128xf32, #tpu.memory_space<vmem>>, vector<1x128xf32>
    %20 = vector.broadcast %19 : vector<1x128xf32> to vector<8x128xf32>
    %21 = arith.addf %18, %20 : vector<8x128xf32>
    %c0_17 = arith.constant 0 : index
    %c0_18 = arith.constant 0 : index
    %22 = vector.load %arg8[%c0_17, %c0_18] : memref<8x128xf32, #tpu.memory_space<vmem>>, vector<8x128xf32>
    tpu.vector_store %arg8[%c0_17, %c0_18], %21 {strides = array<i32>} : memref<8x128xf32, #tpu.memory_space<vmem>>, vector<8x128xf32>,
    return
  }
  func.func @transform_0(%arg0: i32) -> (i32, i32) {
    %c0_i32 = arith.constant 0 : i32
    %c0_i32_0 = arith.constant 0 : i32
    return %arg0, %c0_i32 : i32, i32
  }
  func.func @transform_1(%arg0: i32) -> (i32, i32) {
    %c0_i32 = arith.constant 0 : i32
    %c0_i32_0 = arith.constant 0 : i32
    %c0_i32_1 = arith.constant 0 : i32
    return %c0_i32, %c0_i32_0 : i32, i32
  }
  func.func @transform_2(%arg0: i32) -> (i32, i32) {
    %c0_i32 = arith.constant 0 : i32
    %c0_i32_0 = arith.constant 0 : i32
    %c0_i32_1 = arith.constant 0 : i32
    return %c0_i32, %c0_i32_0 : i32, i32
  }
  func.func @transform_3(%arg0: i32) -> (i32, i32) {
    %c0_i32 = arith.constant 0 : i32
    %c0_i32_0 = arith.constant 0 : i32
    %c0_i32_1 = arith.constant 0 : i32
    return %c0_i32, %c0_i32_0 : i32, i32
  }
  func.func @transform_4(%arg0: i32) -> (i32, i32) {
    %c0_i32 = arith.constant 0 : i32
    %c0_i32_0 = arith.constant 0 : i32
    %c0_i32_1 = arith.constant 0 : i32
    return %c0_i32, %c0_i32_0 : i32, i32
  }
  func.func @transform_5(%arg0: i32) -> (i32, i32) {
    %c0_i32 = arith.constant 0 : i32
    %c0_i32_0 = arith.constant 0 : i32
    %c0_i32_1 = arith.constant 0 : i32
    return %c0_i32, %c0_i32_0 : i32, i32
  }
  func.func @transform_6(%arg0: i32) -> (i32, i32) {
    %c0_i32 = arith.constant 0 : i32
    %c0_i32_0 = arith.constant 0 : i32
    %c0_i32_1 = arith.constant 0 : i32
    return %c0_i32, %c0_i32_0 : i32, i32
  }
  func.func @transform_7(%arg0: i32) -> (i32, i32) {
    %c0_i32 = arith.constant 0 : i32
    %c0_i32_0 = arith.constant 0 : i32
    return %arg0, %c0_i32 : i32, i32
  }
}

</mosaic_0001>

<llo_original>
// kernel: tpu_custom_call.1
$region0: #{tpu_custom_call.1}
  #allocation0 [shape = 'u32[]', space=smem, size = 0x4, offset = 0x4, fixed_abs, tag = 'smem constant byte address 0x4 - core index']
  #allocation1 [shape = 'u32[144,128]{1,0:T(1,128)}', space=vmem, size = 0x12000, scoped, tag = 'internal scratch']
  %s0 = inlined_call_operand.hbm [shape: bf16[8,1536], index: 0, kind: input, shape index: {}]
  %s1 = inlined_call_operand.hbm [shape: bf16[1536,512], index: 1, kind: input, shape index: {}]
  %s2 = inlined_call_operand.hbm [shape: f32[1,512], index: 2, kind: input, shape index: {}]
  %s3 = inlined_call_operand.hbm [shape: bf16[512,256], index: 3, kind: input, shape index: {}]
  %s4 = inlined_call_operand.hbm [shape: f32[1,256], index: 4, kind: input, shape index: {}]
  %s5 = inlined_call_operand.hbm [shape: bf16[256,128], index: 5, kind: input, shape index: {}]
  %s6 = inlined_call_operand.hbm [shape: f32[1,128], index: 6, kind: input, shape index: {}]
  %s7 = inlined_call_operand.hbm [shape: f32[8,128], index: 7, kind: output, shape index: {}]
  %s8 = sld [smem:[#allocation0]]
  $region66: #{tpu_custom_call.1} parent=0
    _
  %s10 = ssub.s32 1, %s8
  %s11 = scalar_select 0, %s10, %s8
  $region1: #{tpu_custom_call.1} parent=0
    #allocation2 [shape = 'u8[24576]{0}', space=vmem, size = 0x6000, scoped, tag = 'input window, operand 0, single buffered']
    #allocation3 [shape = 's32[1]{0}', space=sflag, size = 0x4, scoped, tag = 'scoped memory for tpu_custom_call.1']
    #allocation4 [shape = 's32[1]{0}', space=sflag, size = 0x4, scoped, tag = 'scoped memory for tpu_custom_call.1']
    #allocation5 [shape = 'u8[1572864]{0}', space=vmem, size = 0x180000, scoped, tag = 'input window, operand 1, single buffered']
    #allocation6 [shape = 's32[1]{0}', space=sflag, size = 0x4, scoped, tag = 'scoped memory for tpu_custom_call.1']
    #allocation7 [shape = 'u8[2048]{0}', space=vmem, size = 0x800, scoped, tag = 'input window, operand 2, single buffered']
    #allocation8 [shape = 'u8[262144]{0}', space=vmem, size = 0x40000, scoped, tag = 'input window, operand 3, single buffered']
    #allocation9 [shape = 's32[1]{0}', space=sflag, size = 0x4, scoped, tag = 'scoped memory for tpu_custom_call.1']
    #allocation10 [shape = 'u8[1024]{0}', space=vmem, size = 0x400, scoped, tag = 'input window, operand 4, single buffered']
    #allocation11 [shape = 'u8[65536]{0}', space=vmem, size = 0x10000, scoped, tag = 'input window, operand 5, single buffered']
    #allocation12 [shape = 's32[1]{0}', space=sflag, size = 0x4, scoped, tag = 'scoped memory for tpu_custom_call.1']
    #allocation13 [shape = 'u8[512]{0}', space=vmem, size = 0x400, scoped, tag = 'input window, operand 6, single buffered']
    #allocation14 [shape = 'u8[4096]{0}', space=vmem, size = 0x1000, scoped, tag = 'output window, operand 0, single buffered']
    %12 = vsyncpa [#allocation3], 0
    %13 = vsyncpa [#allocation6], 0
    %14 = vsyncpa [#allocation9], 0
    %15 = vsyncpa [#allocation12], 0
    %16 = vsyncpa [#allocation4], 0
    // Predicated region
    $region2: #{tpu_custom_call.1} parent=1 // pred_check
      _
    $region3: #{tpu_custom_call.1} parent=1 // pred_check_branch
      %18 = sbr.rel (0) target = $region5
    $region4: #{tpu_custom_call.1} parent=1 // pred_region
      %s20 = ssub.s32 768, 768
      %21 = vsyncadd [#allocation3], %s20
      %s23 = sshll.u32 [#allocation2], 4
      %s24 = int_to_ptr.vmem [resolvable:$true] %s23
      %26 = dma.hbm_to_vmem [thread:$0]  %s0, 768, %s24, [#allocation3]
    $region5: #{tpu_custom_call.1} parent=1 // pred_fallthru
      _
    // Predicated region
    $region6: #{tpu_custom_call.1} parent=1 // pred_check
      _
    $region7: #{tpu_custom_call.1} parent=1 // pred_check_branch
      %28 = sbr.rel (0) target = $region9
    $region8: #{tpu_custom_call.1} parent=1 // pred_region
      %s30 = ssub.s32 49152, 49152
      %31 = vsyncadd [#allocation6], %s30
      %s32 = sshll.u32 [#allocation5], 4
      %s33 = int_to_ptr.vmem [resolvable:$true] %s32
      %38 = dma.hbm_to_vmem [thread:$0]  %s1, 49152, %s33, [#allocation6], 256, 256, 16
    $region9: #{tpu_custom_call.1} parent=1 // pred_fallthru
      _
    // Predicated region
    $region10: #{tpu_custom_call.1} parent=1 // pred_check
      _
    $region11: #{tpu_custom_call.1} parent=1 // pred_check_branch
      %40 = sbr.rel (0) target = $region13
    $region12: #{tpu_custom_call.1} parent=1 // pred_region
      %s42 = ssub.s32 64, 64
      %43 = vsyncadd [#allocation6], %s42
      %s45 = sshll.u32 [#allocation7], 4
      %s46 = int_to_ptr.vmem [resolvable:$true] %s45
      %48 = dma.hbm_to_vmem [thread:$0]  %s2, 64, %s46, [#allocation6]
    $region13: #{tpu_custom_call.1} parent=1 // pred_fallthru
      _
    // Predicated region
    $region14: #{tpu_custom_call.1} parent=1 // pred_check
      _
    $region15: #{tpu_custom_call.1} parent=1 // pred_check_branch
      %50 = sbr.rel (0) target = $region17
    $region16: #{tpu_custom_call.1} parent=1 // pred_region
      %s52 = ssub.s32 8192, 8192
      %53 = vsyncadd [#allocation9], %s52
      %s54 = sshll.u32 [#allocation8], 4
      %s55 = int_to_ptr.vmem [resolvable:$true] %s54
      %60 = dma.hbm_to_vmem [thread:$0]  %s3, 8192, %s55, [#allocation9], 128, 128, 8
    $region17: #{tpu_custom_call.1} parent=1 // pred_fallthru
      _
    // Predicated region
    $region18: #{tpu_custom_call.1} parent=1 // pred_check
      _
    $region19: #{tpu_custom_call.1} parent=1 // pred_check_branch
      %62 = sbr.rel (0) target = $region21
    $region20: #{tpu_custom_call.1} parent=1 // pred_region
      %s64 = ssub.s32 32, 32
      %65 = vsyncadd [#allocation9], %s64
      %s67 = sshll.u32 [#allocation10], 4
      %s68 = int_to_ptr.vmem [resolvable:$true] %s67
      %70 = dma.hbm_to_vmem [thread:$0]  %s4, 32, %s68, [#allocation9]
    $region21: #{tpu_custom_call.1} parent=1 // pred_fallthru
      _
    // Predicated region
    $region22: #{tpu_custom_call.1} parent=1 // pred_check
      _
    $region23: #{tpu_custom_call.1} parent=1 // pred_check_branch
      %72 = sbr.rel (0) target = $region25
    $region24: #{tpu_custom_call.1} parent=1 // pred_region
      %s74 = ssub.s32 2048, 2048
      %75 = vsyncadd [#allocation12], %s74
      %s76 = sshll.u32 [#allocation11], 4
      %s77 = int_to_ptr.vmem [resolvable:$true] %s76
      %82 = dma.hbm_to_vmem [thread:$0]  %s5, 2048, %s77, [#allocation12], 64, 64, 4
    $region25: #{tpu_custom_call.1} parent=1 // pred_fallthru
      _
    // Predicated region
    $region26: #{tpu_custom_call.1} parent=1 // pred_check
      _
    $region27: #{tpu_custom_call.1} parent=1 // pred_check_branch
      %84 = sbr.rel (0) target = $region29
    $region28: #{tpu_custom_call.1} parent=1 // pred_region
      %s86 = ssub.s32 16, 16
      %87 = vsyncadd [#allocation12], %s86
      %s89 = sshll.u32 [#allocation13], 4
      %s90 = int_to_ptr.vmem [resolvable:$true] %s89
      %92 = dma.hbm_to_vmem [thread:$0]  %s6, 16, %s90, [#allocation12]
    $region29: #{tpu_custom_call.1} parent=1 // pred_fallthru
      _
    // Predicated region
    $region30: #{tpu_custom_call.1} parent=1 // pred_check
      _
    $region31: #{tpu_custom_call.1} parent=1 // pred_check_branch
      %94 = sbr.rel (0) target = $region33
    $region32: #{tpu_custom_call.1} parent=1 // pred_region
      %95 = dma.done [#allocation3], 768
    $region33: #{tpu_custom_call.1} parent=1 // pred_fallthru
      _
    // Predicated region
    $region34: #{tpu_custom_call.1} parent=1 // pred_check
      _
    $region35: #{tpu_custom_call.1} parent=1 // pred_check_branch
      %97 = sbr.rel (0) target = $region37
    $region36: #{tpu_custom_call.1} parent=1 // pred_region
      %98 = dma.done [#allocation6], 49152
    $region37: #{tpu_custom_call.1} parent=1 // pred_fallthru
      _
    // Predicated region
    $region38: #{tpu_custom_call.1} parent=1 // pred_check
      _
    $region39: #{tpu_custom_call.1} parent=1 // pred_check_branch
      %100 = sbr.rel (0) target = $region41
    $region40: #{tpu_custom_call.1} parent=1 // pred_region
      %101 = dma.done [#allocation6], 64
    $region41: #{tpu_custom_call.1} parent=1 // pred_fallthru
      _
    // Predicated region
    $region42: #{tpu_custom_call.1} parent=1 // pred_check
      _
    $region43: #{tpu_custom_call.1} parent=1 // pred_check_branch
      %103 = sbr.rel (0) target = $region45
    $region44: #{tpu_custom_call.1} parent=1 // pred_region
      %104 = dma.done [#allocation9], 8192
    $region45: #{tpu_custom_call.1} parent=1 // pred_fallthru
      _
    // Predicated region
    $region46: #{tpu_custom_call.1} parent=1 // pred_check
      _
    $region47: #{tpu_custom_call.1} parent=1 // pred_check_branch
      %106 = sbr.rel (0) target = $region49
    $region48: #{tpu_custom_call.1} parent=1 // pred_region
      %107 = dma.done [#allocation9], 32
    $region49: #{tpu_custom_call.1} parent=1 // pred_fallthru
      _
    // Predicated region
    $region50: #{tpu_custom_call.1} parent=1 // pred_check
      _
    $region51: #{tpu_custom_call.1} parent=1 // pred_check_branch
      %109 = sbr.rel (0) target = $region53
    $region52: #{tpu_custom_call.1} parent=1 // pred_region
      %110 = dma.done [#allocation12], 2048
    $region53: #{tpu_custom_call.1} parent=1 // pred_fallthru
      _
    // Predicated region
    $region54: #{tpu_custom_call.1} parent=1 // pred_check
      _
    $region55: #{tpu_custom_call.1} parent=1 // pred_check_branch
      %112 = sbr.rel (0) target = $region57
    $region56: #{tpu_custom_call.1} parent=1 // pred_region
      %113 = dma.done [#allocation12], 16
    $region57: #{tpu_custom_call.1} parent=1 // pred_fallthru
      _
    %v115 = vld [vmem:[#allocation2] sm:$0xff]
    %v116 = vld [vmem:[#allocation2 + $0x8] sm:$0xff]
    %v117 = vld [vmem:[#allocation2 + $0x10] sm:$0xff]
    %v118 = vld [vmem:[#allocation2 + $0x18] sm:$0xff]
    %v119 = vld [vmem:[#allocation2 + $0x20] sm:$0xff]
    %v120 = vld [vmem:[#allocation2 + $0x28] sm:$0xff]
    %v121 = vld [vmem:[#allocation5] sm:$0xff]
    %v122 = vld [vmem:[#allocation5 + $0x8] sm:$0xff]
    %v123 = vld [vmem:[#allocation5 + $0x10] sm:$0xff]
    %v124 = vld [vmem:[#allocation5 + $0x18] sm:$0xff]
    %v125 = vld [vmem:[#allocation5 + $0x20] sm:$0xff]
    %v126 = vld [vmem:[#allocation5 + $0x28] sm:$0xff]
    %v127 = vld [vmem:[#allocation5 + $0x30] sm:$0xff]
    %v128 = vld [vmem:[#allocation5 + $0x38] sm:$0xff]
    %v129 = vld [vmem:[#allocation5 + $0x40] sm:$0xff]
    %v130 = vld [vmem:[#allocation5 + $0x48] sm:$0xff]
    %v131 = vld [vmem:[#allocation5 + $0x50] sm:$0xff]
    %v132 = vld [vmem:[#allocation5 + $0x58] sm:$0xff]
    %v133 = vld [vmem:[#allocation5 + $0x60] sm:$0xff]
    %v134 = vld [vmem:[#allocation5 + $0x68] sm:$0xff]
    %v135 = vld [vmem:[#allocation5 + $0x70] sm:$0xff]
    %v136 = vld [vmem:[#allocation5 + $0x78] sm:$0xff]
    %v137 = vld [vmem:[#allocation5 + $0x80] sm:$0xff]
    %v138 = vld [vmem:[#allocation5 + $0x88] sm:$0xff]
    %v139 = vld [vmem:[#allocation5 + $0x90] sm:$0xff]
    %v140 = vld [vmem:[#allocation5 + $0x98] sm:$0xff]
    %v141 = vld [vmem:[#allocation5 + $0xa0] sm:$0xff]
    %v142 = vld [vmem:[#allocation5 + $0xa8] sm:$0xff]
    %v143 = vld [vmem:[#allocation5 + $0xb0] sm:$0xff]
    %v144 = vld [vmem:[#allocation5 + $0xb8] sm:$0xff]
    %v145 = vld [vmem:[#allocation5 + $0xc0] sm:$0xff]
    %v146 = vld [vmem:[#allocation5 + $0xc8] sm:$0xff]
    %v147 = vld [vmem:[#allocation5 + $0xd0] sm:$0xff]
    %v148 = vld [vmem:[#allocation5 + $0xd8] sm:$0xff]
    %v149 = vld [vmem:[#allocation5 + $0xe0] sm:$0xff]
    %v150 = vld [vmem:[#allocation5 + $0xe8] sm:$0xff]
    %v151 = vld [vmem:[#allocation5 + $0xf0] sm:$0xff]
    %v152 = vld [vmem:[#allocation5 + $0xf8] sm:$0xff]
    %v153 = vld [vmem:[#allocation5 + $0x100] sm:$0xff]
    %v154 = vld [vmem:[#allocation5 + $0x108] sm:$0xff]
    %v155 = vld [vmem:[#allocation5 + $0x110] sm:$0xff]
    %v156 = vld [vmem:[#allocation5 + $0x118] sm:$0xff]
    %v157 = vld [vmem:[#allocation5 + $0x120] sm:$0xff]
    %v158 = vld [vmem:[#allocation5 + $0x128] sm:$0xff]
    %v159 = vld [vmem:[#allocation5 + $0x130] sm:$0xff]
    %v160 = vld [vmem:[#allocation5 + $0x138] sm:$0xff]
    %v161 = vld [vmem:[#allocation5 + $0x140] sm:$0xff]
    %v162 = vld [vmem:[#allocation5 + $0x148] sm:$0xff]
    %v163 = vld [vmem:[#allocation5 + $0x150] sm:$0xff]
    %v164 = vld [vmem:[#allocation5 + $0x158] sm:$0xff]
    %v165 = vld [vmem:[#allocation5 + $0x160] sm:$0xff]
    %v166 = vld [vmem:[#allocation5 + $0x168] sm:$0xff]
    %v167 = vld [vmem:[#allocation5 + $0x170] sm:$0xff]
    %v168 = vld [vmem:[#allocation5 + $0x178] sm:$0xff]
    %v169 = vld [vmem:[#allocation5 + $0x180] sm:$0xff]
    %v170 = vld [vmem:[#allocation5 + $0x188] sm:$0xff]
    %v171 = vld [vmem:[#allocation5 + $0x190] sm:$0xff]
    %v172 = vld [vmem:[#allocation5 + $0x198] sm:$0xff]
    %v173 = vld [vmem:[#allocation5 + $0x1a0] sm:$0xff]
    %v174 = vld [vmem:[#allocation5 + $0x1a8] sm:$0xff]
    %v175 = vld [vmem:[#allocation5 + $0x1b0] sm:$0xff]
    %v176 = vld [vmem:[#allocation5 + $0x1b8] sm:$0xff]
    %v177 = vld [vmem:[#allocation5 + $0x1c0] sm:$0xff]
    %v178 = vld [vmem:[#allocation5 + $0x1c8] sm:$0xff]
    %v179 = vld [vmem:[#allocation5 + $0x1d0] sm:$0xff]
    %v180 = vld [vmem:[#allocation5 + $0x1d8] sm:$0xff]
    %v181 = vld [vmem:[#allocation5 + $0x1e0] sm:$0xff]
    %v182 = vld [vmem:[#allocation5 + $0x1e8] sm:$0xff]
    %v183 = vld [vmem:[#allocation5 + $0x1f0] sm:$0xff]
    %v184 = vld [vmem:[#allocation5 + $0x1f8] sm:$0xff]
    %v185 = vld [vmem:[#allocation5 + $0x200] sm:$0xff]
    %v186 = vld [vmem:[#allocation5 + $0x208] sm:$0xff]
    %v187 = vld [vmem:[#allocation5 + $0x210] sm:$0xff]
    %v188 = vld [vmem:[#allocation5 + $0x218] sm:$0xff]
    %v189 = vld [vmem:[#allocation5 + $0x220] sm:$0xff]
    %v190 = vld [vmem:[#allocation5 + $0x228] sm:$0xff]
    %v191 = vld [vmem:[#allocation5 + $0x230] sm:$0xff]
    %v192 = vld [vmem:[#allocation5 + $0x238] sm:$0xff]
    %v193 = vld [vmem:[#allocation5 + $0x240] sm:$0xff]
    %v194 = vld [vmem:[#allocation5 + $0x248] sm:$0xff]
    %v195 = vld [vmem:[#allocation5 + $0x250] sm:$0xff]
    %v196 = vld [vmem:[#allocation5 + $0x258] sm:$0xff]
    %v197 = vld [vmem:[#allocation5 + $0x260] sm:$0xff]
    %v198 = vld [vmem:[#allocation5 + $0x268] sm:$0xff]
    %v199 = vld [vmem:[#allocation5 + $0x270] sm:$0xff]
    %v200 = vld [vmem:[#allocation5 + $0x278] sm:$0xff]
    %v201 = vld [vmem:[#allocation5 + $0x280] sm:$0xff]
    %v202 = vld [vmem:[#allocation5 + $0x288] sm:$0xff]
    %v203 = vld [vmem:[#allocation5 + $0x290] sm:$0xff]
    %v204 = vld [vmem:[#allocation5 + $0x298] sm:$0xff]
    %v205 = vld [vmem:[#allocation5 + $0x2a0] sm:$0xff]
    %v206 = vld [vmem:[#allocation5 + $0x2a8] sm:$0xff]
    %v207 = vld [vmem:[#allocation5 + $0x2b0] sm:$0xff]
    %v208 = vld [vmem:[#allocation5 + $0x2b8] sm:$0xff]
    %v209 = vld [vmem:[#allocation5 + $0x2c0] sm:$0xff]
    %v210 = vld [vmem:[#allocation5 + $0x2c8] sm:$0xff]
    %v211 = vld [vmem:[#allocation5 + $0x2d0] sm:$0xff]
    %v212 = vld [vmem:[#allocation5 + $0x2d8] sm:$0xff]
    %v213 = vld [vmem:[#allocation5 + $0x2e0] sm:$0xff]
    %v214 = vld [vmem:[#allocation5 + $0x2e8] sm:$0xff]
    %v215 = vld [vmem:[#allocation5 + $0x2f0] sm:$0xff]
    %v216 = vld [vmem:[#allocation5 + $0x2f8] sm:$0xff]
    %v217 = vld [vmem:[#allocation5 + $0x300] sm:$0xff]
    %v218 = vld [vmem:[#allocation5 + $0x308] sm:$0xff]
    %v219 = vld [vmem:[#allocation5 + $0x310] sm:$0xff]
    %v220 = vld [vmem:[#allocation5 + $0x318] sm:$0xff]
    %v221 = vld [vmem:[#allocation5 + $0x320] sm:$0xff]
    %v222 = vld [vmem:[#allocation5 + $0x328] sm:$0xff]
    %v223 = vld [vmem:[#allocation5 + $0x330] sm:$0xff]
    %v224 = vld [vmem:[#allocation5 + $0x338] sm:$0xff]
    %v225 = vld [vmem:[#allocation5 + $0x340] sm:$0xff]
    %v226 = vld [vmem:[#allocation5 + $0x348] sm:$0xff]
    %v227 = vld [vmem:[#allocation5 + $0x350] sm:$0xff]
    %v228 = vld [vmem:[#allocation5 + $0x358] sm:$0xff]
    %v229 = vld [vmem:[#allocation5 + $0x360] sm:$0xff]
    %v230 = vld [vmem:[#allocation5 + $0x368] sm:$0xff]
    %v231 = vld [vmem:[#allocation5 + $0x370] sm:$0xff]
    %v232 = vld [vmem:[#allocation5 + $0x378] sm:$0xff]
    %v233 = vld [vmem:[#allocation5 + $0x380] sm:$0xff]
    %v234 = vld [vmem:[#allocation5 + $0x388] sm:$0xff]
    %v235 = vld [vmem:[#allocation5 + $0x390] sm:$0xff]
    %v236 = vld [vmem:[#allocation5 + $0x398] sm:$0xff]
    %v237 = vld [vmem:[#allocation5 + $0x3a0] sm:$0xff]
    %v238 = vld [vmem:[#allocation5 + $0x3a8] sm:$0xff]
    %v239 = vld [vmem:[#allocation5 + $0x3b0] sm:$0xff]
    %v240 = vld [vmem:[#allocation5 + $0x3b8] sm:$0xff]
    %v241 = vld [vmem:[#allocation5 + $0x3c0] sm:$0xff]
    %v242 = vld [vmem:[#allocation5 + $0x3c8] sm:$0xff]
    %v243 = vld [vmem:[#allocation5 + $0x3d0] sm:$0xff]
    %v244 = vld [vmem:[#allocation5 + $0x3d8] sm:$0xff]
    %v245 = vld [vmem:[#allocation5 + $0x3e0] sm:$0xff]
    %v246 = vld [vmem:[#allocation5 + $0x3e8] sm:$0xff]
    %v247 = vld [vmem:[#allocation5 + $0x3f0] sm:$0xff]
    %v248 = vld [vmem:[#allocation5 + $0x3f8] sm:$0xff]
    %v249 = vld [vmem:[#allocation5 + $0x400] sm:$0xff]
    %v250 = vld [vmem:[#allocation5 + $0x408] sm:$0xff]
    %v251 = vld [vmem:[#allocation5 + $0x410] sm:$0xff]
    %v252 = vld [vmem:[#allocation5 + $0x418] sm:$0xff]
    %v253 = vld [vmem:[#allocation5 + $0x420] sm:$0xff]
    %v254 = vld [vmem:[#allocation5 + $0x428] sm:$0xff]
    %v255 = vld [vmem:[#allocation5 + $0x430] sm:$0xff]
    %v256 = vld [vmem:[#allocation5 + $0x438] sm:$0xff]
    %v257 = vld [vmem:[#allocation5 + $0x440] sm:$0xff]
    %v258 = vld [vmem:[#allocation5 + $0x448] sm:$0xff]
    %v259 = vld [vmem:[#allocation5 + $0x450] sm:$0xff]
    %v260 = vld [vmem:[#allocation5 + $0x458] sm:$0xff]
    %v261 = vld [vmem:[#allocation5 + $0x460] sm:$0xff]
    %v262 = vld [vmem:[#allocation5 + $0x468] sm:$0xff]
    %v263 = vld [vmem:[#allocation5 + $0x470] sm:$0xff]
    %v264 = vld [vmem:[#allocation5 + $0x478] sm:$0xff]
    %v265 = vld [vmem:[#allocation5 + $0x480] sm:$0xff]
    %v266 = vld [vmem:[#allocation5 + $0x488] sm:$0xff]
    %v267 = vld [vmem:[#allocation5 + $0x490] sm:$0xff]
    %v268 = vld [vmem:[#allocation5 + $0x498] sm:$0xff]
    %v269 = vld [vmem:[#allocation5 + $0x4a0] sm:$0xff]
    %v270 = vld [vmem:[#allocation5 + $0x4a8] sm:$0xff]
    %v271 = vld [vmem:[#allocation5 + $0x4b0] sm:$0xff]
    %v272 = vld [vmem:[#allocation5 + $0x4b8] sm:$0xff]
    %v273 = vld [vmem:[#allocation5 + $0x4c0] sm:$0xff]
    %v274 = vld [vmem:[#allocation5 + $0x4c8] sm:$0xff]
    %v275 = vld [vmem:[#allocation5 + $0x4d0] sm:$0xff]
    %v276 = vld [vmem:[#allocation5 + $0x4d8] sm:$0xff]
    %v277 = vld [vmem:[#allocation5 + $0x4e0] sm:$0xff]
    %v278 = vld [vmem:[#allocation5 + $0x4e8] sm:$0xff]
    %v279 = vld [vmem:[#allocation5 + $0x4f0] sm:$0xff]
    %v280 = vld [vmem:[#allocation5 + $0x4f8] sm:$0xff]
    %v281 = vld [vmem:[#allocation5 + $0x500] sm:$0xff]
    %v282 = vld [vmem:[#allocation5 + $0x508] sm:$0xff]
    %v283 = vld [vmem:[#allocation5 + $0x510] sm:$0xff]
    %v284 = vld [vmem:[#allocation5 + $0x518] sm:$0xff]
    %v285 = vld [vmem:[#allocation5 + $0x520] sm:$0xff]
    %v286 = vld [vmem:[#allocation5 + $0x528] sm:$0xff]
    %v287 = vld [vmem:[#allocation5 + $0x530] sm:$0xff]
    %v288 = vld [vmem:[#allocation5 + $0x538] sm:$0xff]
    %v289 = vld [vmem:[#allocation5 + $0x540] sm:$0xff]
    %v290 = vld [vmem:[#allocation5 + $0x548] sm:$0xff]
    %v291 = vld [vmem:[#allocation5 + $0x550] sm:$0xff]
    %v292 = vld [vmem:[#allocation5 + $0x558] sm:$0xff]
    %v293 = vld [vmem:[#allocation5 + $0x560] sm:$0xff]
    %v294 = vld [vmem:[#allocation5 + $0x568] sm:$0xff]
    %v295 = vld [vmem:[#allocation5 + $0x570] sm:$0xff]
    %v296 = vld [vmem:[#allocation5 + $0x578] sm:$0xff]
    %v297 = vld [vmem:[#allocation5 + $0x580] sm:$0xff]
    %v298 = vld [vmem:[#allocation5 + $0x588] sm:$0xff]
    %v299 = vld [vmem:[#allocation5 + $0x590] sm:$0xff]
    %v300 = vld [vmem:[#allocation5 + $0x598] sm:$0xff]
    %v301 = vld [vmem:[#allocation5 + $0x5a0] sm:$0xff]
    %v302 = vld [vmem:[#allocation5 + $0x5a8] sm:$0xff]
    %v303 = vld [vmem:[#allocation5 + $0x5b0] sm:$0xff]
    %v304 = vld [vmem:[#allocation5 + $0x5b8] sm:$0xff]
    %v305 = vld [vmem:[#allocation5 + $0x5c0] sm:$0xff]
    %v306 = vld [vmem:[#allocation5 + $0x5c8] sm:$0xff]
    %v307 = vld [vmem:[#allocation5 + $0x5d0] sm:$0xff]
    %v308 = vld [vmem:[#allocation5 + $0x5d8] sm:$0xff]
    %v309 = vld [vmem:[#allocation5 + $0x5e0] sm:$0xff]
    %v310 = vld [vmem:[#allocation5 + $0x5e8] sm:$0xff]
    %v311 = vld [vmem:[#allocation5 + $0x5f0] sm:$0xff]
    %v312 = vld [vmem:[#allocation5 + $0x5f8] sm:$0xff]
    %v313 = vld [vmem:[#allocation5 + $0x600] sm:$0xff]
    %v314 = vld [vmem:[#allocation5 + $0x608] sm:$0xff]
    %v315 = vld [vmem:[#allocation5 + $0x610] sm:$0xff]
    %v316 = vld [vmem:[#allocation5 + $0x618] sm:$0xff]
    %v317 = vld [vmem:[#allocation5 + $0x620] sm:$0xff]
    %v318 = vld [vmem:[#allocation5 + $0x628] sm:$0xff]
    %v319 = vld [vmem:[#allocation5 + $0x630] sm:$0xff]
    %v320 = vld [vmem:[#allocation5 + $0x638] sm:$0xff]
    %v321 = vld [vmem:[#allocation5 + $0x640] sm:$0xff]
    %v322 = vld [vmem:[#allocation5 + $0x648] sm:$0xff]
    %v323 = vld [vmem:[#allocation5 + $0x650] sm:$0xff]
    %v324 = vld [vmem:[#allocation5 + $0x658] sm:$0xff]
    %v325 = vld [vmem:[#allocation5 + $0x660] sm:$0xff]
    %v326 = vld [vmem:[#allocation5 + $0x668] sm:$0xff]
    %v327 = vld [vmem:[#allocation5 + $0x670] sm:$0xff]
    %v328 = vld [vmem:[#allocation5 + $0x678] sm:$0xff]
    %v329 = vld [vmem:[#allocation5 + $0x680] sm:$0xff]
    %v330 = vld [vmem:[#allocation5 + $0x688] sm:$0xff]
    %v331 = vld [vmem:[#allocation5 + $0x690] sm:$0xff]
    %v332 = vld [vmem:[#allocation5 + $0x698] sm:$0xff]
    %v333 = vld [vmem:[#allocation5 + $0x6a0] sm:$0xff]
    %v334 = vld [vmem:[#allocation5 + $0x6a8] sm:$0xff]
    %v335 = vld [vmem:[#allocation5 + $0x6b0] sm:$0xff]
    %v336 = vld [vmem:[#allocation5 + $0x6b8] sm:$0xff]
    %v337 = vld [vmem:[#allocation5 + $0x6c0] sm:$0xff]
    %v338 = vld [vmem:[#allocation5 + $0x6c8] sm:$0xff]
    %v339 = vld [vmem:[#allocation5 + $0x6d0] sm:$0xff]
    %v340 = vld [vmem:[#allocation5 + $0x6d8] sm:$0xff]
    %v341 = vld [vmem:[#allocation5 + $0x6e0] sm:$0xff]
    %v342 = vld [vmem:[#allocation5 + $0x6e8] sm:$0xff]
    %v343 = vld [vmem:[#allocation5 + $0x6f0] sm:$0xff]
    %v344 = vld [vmem:[#allocation5 + $0x6f8] sm:$0xff]
    %v345 = vld [vmem:[#allocation5 + $0x700] sm:$0xff]
    %v346 = vld [vmem:[#allocation5 + $0x708] sm:$0xff]
    %v347 = vld [vmem:[#allocation5 + $0x710] sm:$0xff]
    %v348 = vld [vmem:[#allocation5 + $0x718] sm:$0xff]
    %v349 = vld [vmem:[#allocation5 + $0x720] sm:$0xff]
    %v350 = vld [vmem:[#allocation5 + $0x728] sm:$0xff]
    %v351 = vld [vmem:[#allocation5 + $0x730] sm:$0xff]
    %v352 = vld [vmem:[#allocation5 + $0x738] sm:$0xff]
    %v353 = vld [vmem:[#allocation5 + $0x740] sm:$0xff]
    %v354 = vld [vmem:[#allocation5 + $0x748] sm:$0xff]
    %v355 = vld [vmem:[#allocation5 + $0x750] sm:$0xff]
    %v356 = vld [vmem:[#allocation5 + $0x758] sm:$0xff]
    %v357 = vld [vmem:[#allocation5 + $0x760] sm:$0xff]
    %v358 = vld [vmem:[#allocation5 + $0x768] sm:$0xff]
    %v359 = vld [vmem:[#allocation5 + $0x770] sm:$0xff]
    %v360 = vld [vmem:[#allocation5 + $0x778] sm:$0xff]
    %v361 = vld [vmem:[#allocation5 + $0x780] sm:$0xff]
    %v362 = vld [vmem:[#allocation5 + $0x788] sm:$0xff]
    %v363 = vld [vmem:[#allocation5 + $0x790] sm:$0xff]
    %v364 = vld [vmem:[#allocation5 + $0x798] sm:$0xff]
    %v365 = vld [vmem:[#allocation5 + $0x7a0] sm:$0xff]
    %v366 = vld [vmem:[#allocation5 + $0x7a8] sm:$0xff]
    %v367 = vld [vmem:[#allocation5 + $0x7b0] sm:$0xff]
    %v368 = vld [vmem:[#allocation5 + $0x7b8] sm:$0xff]
    %v369 = vld [vmem:[#allocation5 + $0x7c0] sm:$0xff]
    %v370 = vld [vmem:[#allocation5 + $0x7c8] sm:$0xff]
    %v371 = vld [vmem:[#allocation5 + $0x7d0] sm:$0xff]
    %v372 = vld [vmem:[#allocation5 + $0x7d8] sm:$0xff]
    %v373 = vld [vmem:[#allocation5 + $0x7e0] sm:$0xff]
    %v374 = vld [vmem:[#allocation5 + $0x7e8] sm:$0xff]
    %v375 = vld [vmem:[#allocation5 + $0x7f0] sm:$0xff]
    %v376 = vld [vmem:[#allocation5 + $0x7f8] sm:$0xff]
    %v377 = vld [vmem:[#allocation5 + $0x800] sm:$0xff]
    %v378 = vld [vmem:[#allocation5 + $0x808] sm:$0xff]
    %v379 = vld [vmem:[#allocation5 + $0x810] sm:$0xff]
    %v380 = vld [vmem:[#allocation5 + $0x818] sm:$0xff]
    %v381 = vld [vmem:[#allocation5 + $0x820] sm:$0xff]
    %v382 = vld [vmem:[#allocation5 + $0x828] sm:$0xff]
    %v383 = vld [vmem:[#allocation5 + $0x830] sm:$0xff]
    %v384 = vld [vmem:[#allocation5 + $0x838] sm:$0xff]
    %v385 = vld [vmem:[#allocation5 + $0x840] sm:$0xff]
    %v386 = vld [vmem:[#allocation5 + $0x848] sm:$0xff]
    %v387 = vld [vmem:[#allocation5 + $0x850] sm:$0xff]
    %v388 = vld [vmem:[#allocation5 + $0x858] sm:$0xff]
    %v389 = vld [vmem:[#allocation5 + $0x860] sm:$0xff]
    %v390 = vld [vmem:[#allocation5 + $0x868] sm:$0xff]
    %v391 = vld [vmem:[#allocation5 + $0x870] sm:$0xff]
    %v392 = vld [vmem:[#allocation5 + $0x878] sm:$0xff]
    %v393 = vld [vmem:[#allocation5 + $0x880] sm:$0xff]
    %v394 = vld [vmem:[#allocation5 + $0x888] sm:$0xff]
    %v395 = vld [vmem:[#allocation5 + $0x890] sm:$0xff]
    %v396 = vld [vmem:[#allocation5 + $0x898] sm:$0xff]
    %v397 = vld [vmem:[#allocation5 + $0x8a0] sm:$0xff]
    %v398 = vld [vmem:[#allocation5 + $0x8a8] sm:$0xff]
    %v399 = vld [vmem:[#allocation5 + $0x8b0] sm:$0xff]
    %v400 = vld [vmem:[#allocation5 + $0x8b8] sm:$0xff]
    %v401 = vld [vmem:[#allocation5 + $0x8c0] sm:$0xff]
    %v402 = vld [vmem:[#allocation5 + $0x8c8] sm:$0xff]
    %v403 = vld [vmem:[#allocation5 + $0x8d0] sm:$0xff]
    %v404 = vld [vmem:[#allocation5 + $0x8d8] sm:$0xff]
    %v405 = vld [vmem:[#allocation5 + $0x8e0] sm:$0xff]
    %v406 = vld [vmem:[#allocation5 + $0x8e8] sm:$0xff]
    %v407 = vld [vmem:[#allocation5 + $0x8f0] sm:$0xff]
    %v408 = vld [vmem:[#allocation5 + $0x8f8] sm:$0xff]
    %v409 = vld [vmem:[#allocation5 + $0x900] sm:$0xff]
    %v410 = vld [vmem:[#allocation5 + $0x908] sm:$0xff]
    %v411 = vld [vmem:[#allocation5 + $0x910] sm:$0xff]
    %v412 = vld [vmem:[#allocation5 + $0x918] sm:$0xff]
    %v413 = vld [vmem:[#allocation5 + $0x920] sm:$0xff]
    %v414 = vld [vmem:[#allocation5 + $0x928] sm:$0xff]
    %v415 = vld [vmem:[#allocation5 + $0x930] sm:$0xff]
    %v416 = vld [vmem:[#allocation5 + $0x938] sm:$0xff]
    %v417 = vld [vmem:[#allocation5 + $0x940] sm:$0xff]
    %v418 = vld [vmem:[#allocation5 + $0x948] sm:$0xff]
    %v419 = vld [vmem:[#allocation5 + $0x950] sm:$0xff]
    %v420 = vld [vmem:[#allocation5 + $0x958] sm:$0xff]
    %v421 = vld [vmem:[#allocation5 + $0x960] sm:$0xff]
    %v422 = vld [vmem:[#allocation5 + $0x968] sm:$0xff]
    %v423 = vld [vmem:[#allocation5 + $0x970] sm:$0xff]
    %v424 = vld [vmem:[#allocation5 + $0x978] sm:$0xff]
    %v425 = vld [vmem:[#allocation5 + $0x980] sm:$0xff]
    %v426 = vld [vmem:[#allocation5 + $0x988] sm:$0xff]
    %v427 = vld [vmem:[#allocation5 + $0x990] sm:$0xff]
    %v428 = vld [vmem:[#allocation5 + $0x998] sm:$0xff]
    %v429 = vld [vmem:[#allocation5 + $0x9a0] sm:$0xff]
    %v430 = vld [vmem:[#allocation5 + $0x9a8] sm:$0xff]
    %v431 = vld [vmem:[#allocation5 + $0x9b0] sm:$0xff]
    %v432 = vld [vmem:[#allocation5 + $0x9b8] sm:$0xff]
    %v433 = vld [vmem:[#allocation5 + $0x9c0] sm:$0xff]
    %v434 = vld [vmem:[#allocation5 + $0x9c8] sm:$0xff]
    %v435 = vld [vmem:[#allocation5 + $0x9d0] sm:$0xff]
    %v436 = vld [vmem:[#allocation5 + $0x9d8] sm:$0xff]
    %v437 = vld [vmem:[#allocation5 + $0x9e0] sm:$0xff]
    %v438 = vld [vmem:[#allocation5 + $0x9e8] sm:$0xff]
    %v439 = vld [vmem:[#allocation5 + $0x9f0] sm:$0xff]
    %v440 = vld [vmem:[#allocation5 + $0x9f8] sm:$0xff]
    %v441 = vld [vmem:[#allocation5 + $0xa00] sm:$0xff]
    %v442 = vld [vmem:[#allocation5 + $0xa08] sm:$0xff]
    %v443 = vld [vmem:[#allocation5 + $0xa10] sm:$0xff]
    %v444 = vld [vmem:[#allocation5 + $0xa18] sm:$0xff]
    %v445 = vld [vmem:[#allocation5 + $0xa20] sm:$0xff]
    %v446 = vld [vmem:[#allocation5 + $0xa28] sm:$0xff]
    %v447 = vld [vmem:[#allocation5 + $0xa30] sm:$0xff]
    %v448 = vld [vmem:[#allocation5 + $0xa38] sm:$0xff]
    %v449 = vld [vmem:[#allocation5 + $0xa40] sm:$0xff]
    %v450 = vld [vmem:[#allocation5 + $0xa48] sm:$0xff]
    %v451 = vld [vmem:[#allocation5 + $0xa50] sm:$0xff]
    %v452 = vld [vmem:[#allocation5 + $0xa58] sm:$0xff]
    %v453 = vld [vmem:[#allocation5 + $0xa60] sm:$0xff]
    %v454 = vld [vmem:[#allocation5 + $0xa68] sm:$0xff]
    %v455 = vld [vmem:[#allocation5 + $0xa70] sm:$0xff]
    %v456 = vld [vmem:[#allocation5 + $0xa78] sm:$0xff]
    %v457 = vld [vmem:[#allocation5 + $0xa80] sm:$0xff]
    %v458 = vld [vmem:[#allocation5 + $0xa88] sm:$0xff]
    %v459 = vld [vmem:[#allocation5 + $0xa90] sm:$0xff]
    %v460 = vld [vmem:[#allocation5 + $0xa98] sm:$0xff]
    %v461 = vld [vmem:[#allocation5 + $0xaa0] sm:$0xff]
    %v462 = vld [vmem:[#allocation5 + $0xaa8] sm:$0xff]
    %v463 = vld [vmem:[#allocation5 + $0xab0] sm:$0xff]
    %v464 = vld [vmem:[#allocation5 + $0xab8] sm:$0xff]
    %v465 = vld [vmem:[#allocation5 + $0xac0] sm:$0xff]
    %v466 = vld [vmem:[#allocation5 + $0xac8] sm:$0xff]
    %v467 = vld [vmem:[#allocation5 + $0xad0] sm:$0xff]
    %v468 = vld [vmem:[#allocation5 + $0xad8] sm:$0xff]
    %v469 = vld [vmem:[#allocation5 + $0xae0] sm:$0xff]
    %v470 = vld [vmem:[#allocation5 + $0xae8] sm:$0xff]
    %v471 = vld [vmem:[#allocation5 + $0xaf0] sm:$0xff]
    %v472 = vld [vmem:[#allocation5 + $0xaf8] sm:$0xff]
    %v473 = vld [vmem:[#allocation5 + $0xb00] sm:$0xff]
    %v474 = vld [vmem:[#allocation5 + $0xb08] sm:$0xff]
    %v475 = vld [vmem:[#allocation5 + $0xb10] sm:$0xff]
    %v476 = vld [vmem:[#allocation5 + $0xb18] sm:$0xff]
    %v477 = vld [vmem:[#allocation5 + $0xb20] sm:$0xff]
    %v478 = vld [vmem:[#allocation5 + $0xb28] sm:$0xff]
    %v479 = vld [vmem:[#allocation5 + $0xb30] sm:$0xff]
    %v480 = vld [vmem:[#allocation5 + $0xb38] sm:$0xff]
    %v481 = vld [vmem:[#allocation5 + $0xb40] sm:$0xff]
    %v482 = vld [vmem:[#allocation5 + $0xb48] sm:$0xff]
    %v483 = vld [vmem:[#allocation5 + $0xb50] sm:$0xff]
    %v484 = vld [vmem:[#allocation5 + $0xb58] sm:$0xff]
    %v485 = vld [vmem:[#allocation5 + $0xb60] sm:$0xff]
    %v486 = vld [vmem:[#allocation5 + $0xb68] sm:$0xff]
    %v487 = vld [vmem:[#allocation5 + $0xb70] sm:$0xff]
    %v488 = vld [vmem:[#allocation5 + $0xb78] sm:$0xff]
    %v489 = vld [vmem:[#allocation5 + $0xb80] sm:$0xff]
    %v490 = vld [vmem:[#allocation5 + $0xb88] sm:$0xff]
    %v491 = vld [vmem:[#allocation5 + $0xb90] sm:$0xff]
    %v492 = vld [vmem:[#allocation5 + $0xb98] sm:$0xff]
    %v493 = vld [vmem:[#allocation5 + $0xba0] sm:$0xff]
    %v494 = vld [vmem:[#allocation5 + $0xba8] sm:$0xff]
    %v495 = vld [vmem:[#allocation5 + $0xbb0] sm:$0xff]
    %v496 = vld [vmem:[#allocation5 + $0xbb8] sm:$0xff]
    %v497 = vld [vmem:[#allocation5 + $0xbc0] sm:$0xff]
    %v498 = vld [vmem:[#allocation5 + $0xbc8] sm:$0xff]
    %v499 = vld [vmem:[#allocation5 + $0xbd0] sm:$0xff]
    %v500 = vld [vmem:[#allocation5 + $0xbd8] sm:$0xff]
    %v501 = vld [vmem:[#allocation5 + $0xbe0] sm:$0xff]
    %v502 = vld [vmem:[#allocation5 + $0xbe8] sm:$0xff]
    %v503 = vld [vmem:[#allocation5 + $0xbf0] sm:$0xff]
    %v504 = vld [vmem:[#allocation5 + $0xbf8] sm:$0xff]
    %v505 = vld [vmem:[#allocation7] sm:$0xf]
    %v507 = vlaneseq
    %v508 = vshrl.u32 %v507, 7
    %v509 = vsub.s32 0, %v508
    %v510 = vrot.slane %v505, %v509
    %v511 = vlaneseq
    %v512 = vshrl.u32 %v511, 7
    %v513 = vsub.s32 1, %v512
    %v514 = vrot.slane %v505, %v513
    %v515 = vlaneseq
    %v516 = vshrl.u32 %v515, 7
    %v517 = vsub.s32 2, %v516
    %v518 = vrot.slane %v505, %v517
    %v519 = vlaneseq
    %v520 = vshrl.u32 %v519, 7
    %v521 = vsub.s32 3, %v520
    %v522 = vrot.slane %v505, %v521
    %v533 = vunpack.c.l.b16 %v115
    %v534 = vunpack.c.h.b16 %v115
    %v535 = vunpack.c.l.b16 %v116
    %v536 = vunpack.c.h.b16 %v116
    %v537 = vunpack.c.l.b16 %v117
    %v538 = vunpack.c.h.b16 %v117
    %v539 = vunpack.c.l.b16 %v118
    %v540 = vunpack.c.h.b16 %v118
    %v541 = vunpack.c.l.b16 %v119
    %v542 = vunpack.c.h.b16 %v119
    %v543 = vunpack.c.l.b16 %v120
    %v544 = vunpack.c.h.b16 %v120
    %v545 = vpack.c.b16 %v533, %v533
    %v546 = vpack.c.b16 %v534, %v534
    %v547 = vpack.c.b16 %v535, %v535
    %v548 = vpack.c.b16 %v536, %v536
    %v549 = vpack.c.b16 %v537, %v537
    %v550 = vpack.c.b16 %v538, %v538
    %v551 = vpack.c.b16 %v539, %v539
    %v552 = vpack.c.b16 %v540, %v540
    %v553 = vpack.c.b16 %v541, %v541
    %v554 = vpack.c.b16 %v542, %v542
    %v555 = vpack.c.b16 %v543, %v543
    %v556 = vpack.c.b16 %v544, %v544
    %v953 = vunpack.c.l.b16 %v121
    %v954 = vunpack.c.h.b16 %v121
    %v955 = vunpack.c.l.b16 %v122
    %v956 = vunpack.c.h.b16 %v122
    %v957 = vunpack.c.l.b16 %v123
    %v958 = vunpack.c.h.b16 %v123
    %v959 = vunpack.c.l.b16 %v124
    %v960 = vunpack.c.h.b16 %v124
    %v961 = vunpack.c.l.b16 %v125
    %v962 = vunpack.c.h.b16 %v125
    %v963 = vunpack.c.l.b16 %v126
    %v964 = vunpack.c.h.b16 %v126
    %v965 = vunpack.c.l.b16 %v127
    %v966 = vunpack.c.h.b16 %v127
    %v967 = vunpack.c.l.b16 %v128
    %v968 = vunpack.c.h.b16 %v128
    %v969 = vunpack.c.l.b16 %v129
    %v970 = vunpack.c.h.b16 %v129
    %v971 = vunpack.c.l.b16 %v130
    %v972 = vunpack.c.h.b16 %v130
    %v973 = vunpack.c.l.b16 %v131
    %v974 = vunpack.c.h.b16 %v131
    %v975 = vunpack.c.l.b16 %v132
    %v976 = vunpack.c.h.b16 %v132
    %v977 = vunpack.c.l.b16 %v133
    %v978 = vunpack.c.h.b16 %v133
    %v979 = vunpack.c.l.b16 %v134
    %v980 = vunpack.c.h.b16 %v134
    %v981 = vunpack.c.l.b16 %v135
    %v982 = vunpack.c.h.b16 %v135
    %v983 = vunpack.c.l.b16 %v136
    %v984 = vunpack.c.h.b16 %v136
    %v985 = vunpack.c.l.b16 %v137
    %v986 = vunpack.c.h.b16 %v137
    %v987 = vunpack.c.l.b16 %v138
    %v988 = vunpack.c.h.b16 %v138
    %v989 = vunpack.c.l.b16 %v139
    %v990 = vunpack.c.h.b16 %v139
    %v991 = vunpack.c.l.b16 %v140
    %v992 = vunpack.c.h.b16 %v140
    %v993 = vunpack.c.l.b16 %v141
    %v994 = vunpack.c.h.b16 %v141
    %v995 = vunpack.c.l.b16 %v142
    %v996 = vunpack.c.h.b16 %v142
    %v997 = vunpack.c.l.b16 %v143
    %v998 = vunpack.c.h.b16 %v143
    %v999 = vunpack.c.l.b16 %v144
    %v1000 = vunpack.c.h.b16 %v144
    %v1001 = vunpack.c.l.b16 %v145
    %v1002 = vunpack.c.h.b16 %v145
    %v1003 = vunpack.c.l.b16 %v146
    %v1004 = vunpack.c.h.b16 %v146
    %v1005 = vunpack.c.l.b16 %v147
    %v1006 = vunpack.c.h.b16 %v147
    %v1007 = vunpack.c.l.b16 %v148
    %v1008 = vunpack.c.h.b16 %v148
    %v1009 = vunpack.c.l.b16 %v149
    %v1010 = vunpack.c.h.b16 %v149
    %v1011 = vunpack.c.l.b16 %v150
    %v1012 = vunpack.c.h.b16 %v150
    %v1013 = vunpack.c.l.b16 %v151
    %v1014 = vunpack.c.h.b16 %v151
    %v1015 = vunpack.c.l.b16 %v152
    %v1016 = vunpack.c.h.b16 %v152
    %v1017 = vunpack.c.l.b16 %v153
    %v1018 = vunpack.c.h.b16 %v153
    %v1019 = vunpack.c.l.b16 %v154
    %v1020 = vunpack.c.h.b16 %v154
    %v1021 = vunpack.c.l.b16 %v155
    %v1022 = vunpack.c.h.b16 %v155
    %v1023 = vunpack.c.l.b16 %v156
    %v1024 = vunpack.c.h.b16 %v156
    %v1025 = vunpack.c.l.b16 %v157
    %v1026 = vunpack.c.h.b16 %v157
    %v1027 = vunpack.c.l.b16 %v158
    %v1028 = vunpack.c.h.b16 %v158
    %v1029 = vunpack.c.l.b16 %v159
    %v1030 = vunpack.c.h.b16 %v159
    %v1031 = vunpack.c.l.b16 %v160
    %v1032 = vunpack.c.h.b16 %v160
    %v1033 = vunpack.c.l.b16 %v161
    %v1034 = vunpack.c.h.b16 %v161
    %v1035 = vunpack.c.l.b16 %v162
    %v1036 = vunpack.c.h.b16 %v162
    %v1037 = vunpack.c.l.b16 %v163
    %v1038 = vunpack.c.h.b16 %v163
    %v1039 = vunpack.c.l.b16 %v164
    %v1040 = vunpack.c.h.b16 %v164
    %v1041 = vunpack.c.l.b16 %v165
    %v1042 = vunpack.c.h.b16 %v165
    %v1043 = vunpack.c.l.b16 %v166
    %v1044 = vunpack.c.h.b16 %v166
    %v1045 = vunpack.c.l.b16 %v167
    %v1046 = vunpack.c.h.b16 %v167
    %v1047 = vunpack.c.l.b16 %v168
    %v1048 = vunpack.c.h.b16 %v168
    %v1049 = vunpack.c.l.b16 %v169
    %v1050 = vunpack.c.h.b16 %v169
    %v1051 = vunpack.c.l.b16 %v170
    %v1052 = vunpack.c.h.b16 %v170
    %v1053 = vunpack.c.l.b16 %v171
    %v1054 = vunpack.c.h.b16 %v171
    %v1055 = vunpack.c.l.b16 %v172
    %v1056 = vunpack.c.h.b16 %v172
    %v1057 = vunpack.c.l.b16 %v173
    %v1058 = vunpack.c.h.b16 %v173
    %v1059 = vunpack.c.l.b16 %v174
    %v1060 = vunpack.c.h.b16 %v174
    %v1061 = vunpack.c.l.b16 %v175
    %v1062 = vunpack.c.h.b16 %v175
    %v1063 = vunpack.c.l.b16 %v176
    %v1064 = vunpack.c.h.b16 %v176
    %v1065 = vunpack.c.l.b16 %v177
    %v1066 = vunpack.c.h.b16 %v177
    %v1067 = vunpack.c.l.b16 %v178
    %v1068 = vunpack.c.h.b16 %v178
    %v1069 = vunpack.c.l.b16 %v179
    %v1070 = vunpack.c.h.b16 %v179
    %v1071 = vunpack.c.l.b16 %v180
    %v1072 = vunpack.c.h.b16 %v180
    %v1073 = vunpack.c.l.b16 %v181
    %v1074 = vunpack.c.h.b16 %v181
    %v1075 = vunpack.c.l.b16 %v182
    %v1076 = vunpack.c.h.b16 %v182
    %v1077 = vunpack.c.l.b16 %v183
    %v1078 = vunpack.c.h.b16 %v183
    %v1079 = vunpack.c.l.b16 %v184
    %v1080 = vunpack.c.h.b16 %v184
    %v1081 = vunpack.c.l.b16 %v185
    %v1082 = vunpack.c.h.b16 %v185
    %v1083 = vunpack.c.l.b16 %v186
    %v1084 = vunpack.c.h.b16 %v186
    %v1085 = vunpack.c.l.b16 %v187
    %v1086 = vunpack.c.h.b16 %v187
    %v1087 = vunpack.c.l.b16 %v188
    %v1088 = vunpack.c.h.b16 %v188
    %v1089 = vunpack.c.l.b16 %v189
    %v1090 = vunpack.c.h.b16 %v189
    %v1091 = vunpack.c.l.b16 %v190
    %v1092 = vunpack.c.h.b16 %v190
    %v1093 = vunpack.c.l.b16 %v191
    %v1094 = vunpack.c.h.b16 %v191
    %v1095 = vunpack.c.l.b16 %v192
    %v1096 = vunpack.c.h.b16 %v192
    %v1097 = vunpack.c.l.b16 %v193
    %v1098 = vunpack.c.h.b16 %v193
    %v1099 = vunpack.c.l.b16 %v194
    %v1100 = vunpack.c.h.b16 %v194
    %v1101 = vunpack.c.l.b16 %v195
    %v1102 = vunpack.c.h.b16 %v195
    %v1103 = vunpack.c.l.b16 %v196
    %v1104 = vunpack.c.h.b16 %v196
    %v1105 = vunpack.c.l.b16 %v197
    %v1106 = vunpack.c.h.b16 %v197
    %v1107 = vunpack.c.l.b16 %v198
    %v1108 = vunpack.c.h.b16 %v198
    %v1109 = vunpack.c.l.b16 %v199
    %v1110 = vunpack.c.h.b16 %v199
    %v1111 = vunpack.c.l.b16 %v200
    %v1112 = vunpack.c.h.b16 %v200
    %v1113 = vunpack.c.l.b16 %v201
    %v1114 = vunpack.c.h.b16 %v201
    %v1115 = vunpack.c.l.b16 %v202
    %v1116 = vunpack.c.h.b16 %v202
    %v1117 = vunpack.c.l.b16 %v203
    %v1118 = vunpack.c.h.b16 %v203
    %v1119 = vunpack.c.l.b16 %v204
    %v1120 = vunpack.c.h.b16 %v204
    %v1121 = vunpack.c.l.b16 %v205
    %v1122 = vunpack.c.h.b16 %v205
    %v1123 = vunpack.c.l.b16 %v206
    %v1124 = vunpack.c.h.b16 %v206
    %v1125 = vunpack.c.l.b16 %v207
    %v1126 = vunpack.c.h.b16 %v207
    %v1127 = vunpack.c.l.b16 %v208
    %v1128 = vunpack.c.h.b16 %v208
    %v1129 = vunpack.c.l.b16 %v209
    %v1130 = vunpack.c.h.b16 %v209
    %v1131 = vunpack.c.l.b16 %v210
    %v1132 = vunpack.c.h.b16 %v210
    %v1133 = vunpack.c.l.b16 %v211
    %v1134 = vunpack.c.h.b16 %v211
    %v1135 = vunpack.c.l.b16 %v212
    %v1136 = vunpack.c.h.b16 %v212
    %v1137 = vunpack.c.l.b16 %v213
    %v1138 = vunpack.c.h.b16 %v213
    %v1139 = vunpack.c.l.b16 %v214
    %v1140 = vunpack.c.h.b16 %v214
    %v1141 = vunpack.c.l.b16 %v215
    %v1142 = vunpack.c.h.b16 %v215
    %v1143 = vunpack.c.l.b16 %v216
    %v1144 = vunpack.c.h.b16 %v216
    %v1145 = vunpack.c.l.b16 %v217
    %v1146 = vunpack.c.h.b16 %v217
    %v1147 = vunpack.c.l.b16 %v218
    %v1148 = vunpack.c.h.b16 %v218
    %v1149 = vunpack.c.l.b16 %v219
    %v1150 = vunpack.c.h.b16 %v219
    %v1151 = vunpack.c.l.b16 %v220
    %v1152 = vunpack.c.h.b16 %v220
    %v1153 = vunpack.c.l.b16 %v221
    %v1154 = vunpack.c.h.b16 %v221
    %v1155 = vunpack.c.l.b16 %v222
    %v1156 = vunpack.c.h.b16 %v222
    %v1157 = vunpack.c.l.b16 %v223
    %v1158 = vunpack.c.h.b16 %v223
    %v1159 = vunpack.c.l.b16 %v224
    %v1160 = vunpack.c.h.b16 %v224
    %v1161 = vunpack.c.l.b16 %v225
    %v1162 = vunpack.c.h.b16 %v225
    %v1163 = vunpack.c.l.b16 %v226
    %v1164 = vunpack.c.h.b16 %v226
    %v1165 = vunpack.c.l.b16 %v227
    %v1166 = vunpack.c.h.b16 %v227
    %v1167 = vunpack.c.l.b16 %v228
    %v1168 = vunpack.c.h.b16 %v228
    %v1169 = vunpack.c.l.b16 %v229
    %v1170 = vunpack.c.h.b16 %v229
    %v1171 = vunpack.c.l.b16 %v230
    %v1172 = vunpack.c.h.b16 %v230
    %v1173 = vunpack.c.l.b16 %v231
    %v1174 = vunpack.c.h.b16 %v231
    %v1175 = vunpack.c.l.b16 %v232
    %v1176 = vunpack.c.h.b16 %v232
    %v1177 = vunpack.c.l.b16 %v233
    %v1178 = vunpack.c.h.b16 %v233
    %v1179 = vunpack.c.l.b16 %v234
    %v1180 = vunpack.c.h.b16 %v234
    %v1181 = vunpack.c.l.b16 %v235
    %v1182 = vunpack.c.h.b16 %v235
    %v1183 = vunpack.c.l.b16 %v236
    %v1184 = vunpack.c.h.b16 %v236
    %v1185 = vunpack.c.l.b16 %v237
    %v1186 = vunpack.c.h.b16 %v237
    %v1187 = vunpack.c.l.b16 %v238
    %v1188 = vunpack.c.h.b16 %v238
    %v1189 = vunpack.c.l.b16 %v239
    %v1190 = vunpack.c.h.b16 %v239
    %v1191 = vunpack.c.l.b16 %v240
    %v1192 = vunpack.c.h.b16 %v240
    %v1193 = vunpack.c.l.b16 %v241
    %v1194 = vunpack.c.h.b16 %v241
    %v1195 = vunpack.c.l.b16 %v242
    %v1196 = vunpack.c.h.b16 %v242
    %v1197 = vunpack.c.l.b16 %v243
    %v1198 = vunpack.c.h.b16 %v243
    %v1199 = vunpack.c.l.b16 %v244
    %v1200 = vunpack.c.h.b16 %v244
    %v1201 = vunpack.c.l.b16 %v245
    %v1202 = vunpack.c.h.b16 %v245
    %v1203 = vunpack.c.l.b16 %v246
    %v1204 = vunpack.c.h.b16 %v246
    %v1205 = vunpack.c.l.b16 %v247
    %v1206 = vunpack.c.h.b16 %v247
    %v1207 = vunpack.c.l.b16 %v248
    %v1208 = vunpack.c.h.b16 %v248
    %v1209 = vunpack.c.l.b16 %v249
    %v1210 = vunpack.c.h.b16 %v249
    %v1211 = vunpack.c.l.b16 %v250
    %v1212 = vunpack.c.h.b16 %v250
    %v1213 = vunpack.c.l.b16 %v251
    %v1214 = vunpack.c.h.b16 %v251
    %v1215 = vunpack.c.l.b16 %v252
    %v1216 = vunpack.c.h.b16 %v252
    %v1217 = vunpack.c.l.b16 %v253
    %v1218 = vunpack.c.h.b16 %v253
    %v1219 = vunpack.c.l.b16 %v254
    %v1220 = vunpack.c.h.b16 %v254
    %v1221 = vunpack.c.l.b16 %v255
    %v1222 = vunpack.c.h.b16 %v255
    %v1223 = vunpack.c.l.b16 %v256
    %v1224 = vunpack.c.h.b16 %v256
    %v1225 = vunpack.c.l.b16 %v257
    %v1226 = vunpack.c.h.b16 %v257
    %v1227 = vunpack.c.l.b16 %v258
    %v1228 = vunpack.c.h.b16 %v258
    %v1229 = vunpack.c.l.b16 %v259
    %v1230 = vunpack.c.h.b16 %v259
    %v1231 = vunpack.c.l.b16 %v260
    %v1232 = vunpack.c.h.b16 %v260
    %v1233 = vunpack.c.l.b16 %v261
    %v1234 = vunpack.c.h.b16 %v261
    %v1235 = vunpack.c.l.b16 %v262
    %v1236 = vunpack.c.h.b16 %v262
    %v1237 = vunpack.c.l.b16 %v263
    %v1238 = vunpack.c.h.b16 %v263
    %v1239 = vunpack.c.l.b16 %v264
    %v1240 = vunpack.c.h.b16 %v264
    %v1241 = vunpack.c.l.b16 %v265
    %v1242 = vunpack.c.h.b16 %v265
    %v1243 = vunpack.c.l.b16 %v266
    %v1244 = vunpack.c.h.b16 %v266
    %v1245 = vunpack.c.l.b16 %v267
    %v1246 = vunpack.c.h.b16 %v267
    %v1247 = vunpack.c.l.b16 %v268
    %v1248 = vunpack.c.h.b16 %v268
    %v1249 = vunpack.c.l.b16 %v269
    %v1250 = vunpack.c.h.b16 %v269
    %v1251 = vunpack.c.l.b16 %v270
    %v1252 = vunpack.c.h.b16 %v270
    %v1253 = vunpack.c.l.b16 %v271
    %v1254 = vunpack.c.h.b16 %v271
    %v1255 = vunpack.c.l.b16 %v272
    %v1256 = vunpack.c.h.b16 %v272
    %v1257 = vunpack.c.l.b16 %v273
    %v1258 = vunpack.c.h.b16 %v273
    %v1259 = vunpack.c.l.b16 %v274
    %v1260 = vunpack.c.h.b16 %v274
    %v1261 = vunpack.c.l.b16 %v275
    %v1262 = vunpack.c.h.b16 %v275
    %v1263 = vunpack.c.l.b16 %v276
    %v1264 = vunpack.c.h.b16 %v276
    %v1265 = vunpack.c.l.b16 %v277
    %v1266 = vunpack.c.h.b16 %v277
    %v1267 = vunpack.c.l.b16 %v278
    %v1268 = vunpack.c.h.b16 %v278
    %v1269 = vunpack.c.l.b16 %v279
    %v1270 = vunpack.c.h.b16 %v279
    %v1271 = vunpack.c.l.b16 %v280
    %v1272 = vunpack.c.h.b16 %v280
    %v1273 = vunpack.c.l.b16 %v281
    %v1274 = vunpack.c.h.b16 %v281
    %v1275 = vunpack.c.l.b16 %v282
    %v1276 = vunpack.c.h.b16 %v282
    %v1277 = vunpack.c.l.b16 %v283
    %v1278 = vunpack.c.h.b16 %v283
    %v1279 = vunpack.c.l.b16 %v284
    %v1280 = vunpack.c.h.b16 %v284
    %v1281 = vunpack.c.l.b16 %v285
    %v1282 = vunpack.c.h.b16 %v285
    %v1283 = vunpack.c.l.b16 %v286
    %v1284 = vunpack.c.h.b16 %v286
    %v1285 = vunpack.c.l.b16 %v287
    %v1286 = vunpack.c.h.b16 %v287
    %v1287 = vunpack.c.l.b16 %v288
    %v1288 = vunpack.c.h.b16 %v288
    %v1289 = vunpack.c.l.b16 %v289
    %v1290 = vunpack.c.h.b16 %v289
    %v1291 = vunpack.c.l.b16 %v290
    %v1292 = vunpack.c.h.b16 %v290
    %v1293 = vunpack.c.l.b16 %v291
    %v1294 = vunpack.c.h.b16 %v291
    %v1295 = vunpack.c.l.b16 %v292
    %v1296 = vunpack.c.h.b16 %v292
    %v1297 = vunpack.c.l.b16 %v293
    %v1298 = vunpack.c.h.b16 %v293
    %v1299 = vunpack.c.l.b16 %v294
    %v1300 = vunpack.c.h.b16 %v294
    %v1301 = vunpack.c.l.b16 %v295
    %v1302 = vunpack.c.h.b16 %v295
    %v1303 = vunpack.c.l.b16 %v296
    %v1304 = vunpack.c.h.b16 %v296
    %v1305 = vunpack.c.l.b16 %v297
    %v1306 = vunpack.c.h.b16 %v297
    %v1307 = vunpack.c.l.b16 %v298
    %v1308 = vunpack.c.h.b16 %v298
    %v1309 = vunpack.c.l.b16 %v299
    %v1310 = vunpack.c.h.b16 %v299
    %v1311 = vunpack.c.l.b16 %v300
    %v1312 = vunpack.c.h.b16 %v300
    %v1313 = vunpack.c.l.b16 %v301
    %v1314 = vunpack.c.h.b16 %v301
    %v1315 = vunpack.c.l.b16 %v302
    %v1316 = vunpack.c.h.b16 %v302
    %v1317 = vunpack.c.l.b16 %v303
    %v1318 = vunpack.c.h.b16 %v303
    %v1319 = vunpack.c.l.b16 %v304
    %v1320 = vunpack.c.h.b16 %v304
    %v1321 = vunpack.c.l.b16 %v305
    %v1322 = vunpack.c.h.b16 %v305
    %v1323 = vunpack.c.l.b16 %v306
    %v1324 = vunpack.c.h.b16 %v306
    %v1325 = vunpack.c.l.b16 %v307
    %v1326 = vunpack.c.h.b16 %v307
    %v1327 = vunpack.c.l.b16 %v308
    %v1328 = vunpack.c.h.b16 %v308
    %v1329 = vunpack.c.l.b16 %v309
    %v1330 = vunpack.c.h.b16 %v309
    %v1331 = vunpack.c.l.b16 %v310
    %v1332 = vunpack.c.h.b16 %v310
    %v1333 = vunpack.c.l.b16 %v311
    %v1334 = vunpack.c.h.b16 %v311
    %v1335 = vunpack.c.l.b16 %v312
    %v1336 = vunpack.c.h.b16 %v312
    %v1337 = vunpack.c.l.b16 %v313
    %v1338 = vunpack.c.h.b16 %v313
    %v1339 = vunpack.c.l.b16 %v314
    %v1340 = vunpack.c.h.b16 %v314
    %v1341 = vunpack.c.l.b16 %v315
    %v1342 = vunpack.c.h.b16 %v315
    %v1343 = vunpack.c.l.b16 %v316
    %v1344 = vunpack.c.h.b16 %v316
    %v1345 = vunpack.c.l.b16 %v317
    %v1346 = vunpack.c.h.b16 %v317
    %v1347 = vunpack.c.l.b16 %v318
    %v1348 = vunpack.c.h.b16 %v318
    %v1349 = vunpack.c.l.b16 %v319
    %v1350 = vunpack.c.h.b16 %v319
    %v1351 = vunpack.c.l.b16 %v320
    %v1352 = vunpack.c.h.b16 %v320
    %v1353 = vunpack.c.l.b16 %v321
    %v1354 = vunpack.c.h.b16 %v321
    %v1355 = vunpack.c.l.b16 %v322
    %v1356 = vunpack.c.h.b16 %v322
    %v1357 = vunpack.c.l.b16 %v323
    %v1358 = vunpack.c.h.b16 %v323
    %v1359 = vunpack.c.l.b16 %v324
    %v1360 = vunpack.c.h.b16 %v324
    %v1361 = vunpack.c.l.b16 %v325
    %v1362 = vunpack.c.h.b16 %v325
    %v1363 = vunpack.c.l.b16 %v326
    %v1364 = vunpack.c.h.b16 %v326
    %v1365 = vunpack.c.l.b16 %v327
    %v1366 = vunpack.c.h.b16 %v327
    %v1367 = vunpack.c.l.b16 %v328
    %v1368 = vunpack.c.h.b16 %v328
    %v1369 = vunpack.c.l.b16 %v329
    %v1370 = vunpack.c.h.b16 %v329
    %v1371 = vunpack.c.l.b16 %v330
    %v1372 = vunpack.c.h.b16 %v330
    %v1373 = vunpack.c.l.b16 %v331
    %v1374 = vunpack.c.h.b16 %v331
    %v1375 = vunpack.c.l.b16 %v332
    %v1376 = vunpack.c.h.b16 %v332
    %v1377 = vunpack.c.l.b16 %v333
    %v1378 = vunpack.c.h.b16 %v333
    %v1379 = vunpack.c.l.b16 %v334
    %v1380 = vunpack.c.h.b16 %v334
    %v1381 = vunpack.c.l.b16 %v335
    %v1382 = vunpack.c.h.b16 %v335
    %v1383 = vunpack.c.l.b16 %v336
    %v1384 = vunpack.c.h.b16 %v336
    %v1385 = vunpack.c.l.b16 %v337
    %v1386 = vunpack.c.h.b16 %v337
    %v1387 = vunpack.c.l.b16 %v338
    %v1388 = vunpack.c.h.b16 %v338
    %v1389 = vunpack.c.l.b16 %v339
    %v1390 = vunpack.c.h.b16 %v339
    %v1391 = vunpack.c.l.b16 %v340
    %v1392 = vunpack.c.h.b16 %v340
    %v1393 = vunpack.c.l.b16 %v341
    %v1394 = vunpack.c.h.b16 %v341
    %v1395 = vunpack.c.l.b16 %v342
    %v1396 = vunpack.c.h.b16 %v342
    %v1397 = vunpack.c.l.b16 %v343
    %v1398 = vunpack.c.h.b16 %v343
    %v1399 = vunpack.c.l.b16 %v344
    %v1400 = vunpack.c.h.b16 %v344
    %v1401 = vunpack.c.l.b16 %v345
    %v1402 = vunpack.c.h.b16 %v345
    %v1403 = vunpack.c.l.b16 %v346
    %v1404 = vunpack.c.h.b16 %v346
    %v1405 = vunpack.c.l.b16 %v347
    %v1406 = vunpack.c.h.b16 %v347
    %v1407 = vunpack.c.l.b16 %v348
    %v1408 = vunpack.c.h.b16 %v348
    %v1409 = vunpack.c.l.b16 %v349
    %v1410 = vunpack.c.h.b16 %v349
    %v1411 = vunpack.c.l.b16 %v350
    %v1412 = vunpack.c.h.b16 %v350
    %v1413 = vunpack.c.l.b16 %v351
    %v1414 = vunpack.c.h.b16 %v351
    %v1415 = vunpack.c.l.b16 %v352
    %v1416 = vunpack.c.h.b16 %v352
    %v1417 = vunpack.c.l.b16 %v353
    %v1418 = vunpack.c.h.b16 %v353
    %v1419 = vunpack.c.l.b16 %v354
    %v1420 = vunpack.c.h.b16 %v354
    %v1421 = vunpack.c.l.b16 %v355
    %v1422 = vunpack.c.h.b16 %v355
    %v1423 = vunpack.c.l.b16 %v356
    %v1424 = vunpack.c.h.b16 %v356
    %v1425 = vunpack.c.l.b16 %v357
    %v1426 = vunpack.c.h.b16 %v357
    %v1427 = vunpack.c.l.b16 %v358
    %v1428 = vunpack.c.h.b16 %v358
    %v1429 = vunpack.c.l.b16 %v359
    %v1430 = vunpack.c.h.b16 %v359
    %v1431 = vunpack.c.l.b16 %v360
    %v1432 = vunpack.c.h.b16 %v360
    %v1433 = vunpack.c.l.b16 %v361
    %v1434 = vunpack.c.h.b16 %v361
    %v1435 = vunpack.c.l.b16 %v362
    %v1436 = vunpack.c.h.b16 %v362
    %v1437 = vunpack.c.l.b16 %v363
    %v1438 = vunpack.c.h.b16 %v363
    %v1439 = vunpack.c.l.b16 %v364
    %v1440 = vunpack.c.h.b16 %v364
    %v1441 = vunpack.c.l.b16 %v365
    %v1442 = vunpack.c.h.b16 %v365
    %v1443 = vunpack.c.l.b16 %v366
    %v1444 = vunpack.c.h.b16 %v366
    %v1445 = vunpack.c.l.b16 %v367
    %v1446 = vunpack.c.h.b16 %v367
    %v1447 = vunpack.c.l.b16 %v368
    %v1448 = vunpack.c.h.b16 %v368
    %v1449 = vunpack.c.l.b16 %v369
    %v1450 = vunpack.c.h.b16 %v369
    %v1451 = vunpack.c.l.b16 %v370
    %v1452 = vunpack.c.h.b16 %v370
    %v1453 = vunpack.c.l.b16 %v371
    %v1454 = vunpack.c.h.b16 %v371
    %v1455 = vunpack.c.l.b16 %v372
    %v1456 = vunpack.c.h.b16 %v372
    %v1457 = vunpack.c.l.b16 %v373
    %v1458 = vunpack.c.h.b16 %v373
    %v1459 = vunpack.c.l.b16 %v374
    %v1460 = vunpack.c.h.b16 %v374
    %v1461 = vunpack.c.l.b16 %v375
    %v1462 = vunpack.c.h.b16 %v375
    %v1463 = vunpack.c.l.b16 %v376
    %v1464 = vunpack.c.h.b16 %v376
    %v1465 = vunpack.c.l.b16 %v377
    %v1466 = vunpack.c.h.b16 %v377
    %v1467 = vunpack.c.l.b16 %v378
    %v1468 = vunpack.c.h.b16 %v378
    %v1469 = vunpack.c.l.b16 %v379
    %v1470 = vunpack.c.h.b16 %v379
    %v1471 = vunpack.c.l.b16 %v380
    %v1472 = vunpack.c.h.b16 %v380
    %v1473 = vunpack.c.l.b16 %v381
    %v1474 = vunpack.c.h.b16 %v381
    %v1475 = vunpack.c.l.b16 %v382
    %v1476 = vunpack.c.h.b16 %v382
    %v1477 = vunpack.c.l.b16 %v383
    %v1478 = vunpack.c.h.b16 %v383
    %v1479 = vunpack.c.l.b16 %v384
    %v1480 = vunpack.c.h.b16 %v384
    %v1481 = vunpack.c.l.b16 %v385
    %v1482 = vunpack.c.h.b16 %v385
    %v1483 = vunpack.c.l.b16 %v386
    %v1484 = vunpack.c.h.b16 %v386
    %v1485 = vunpack.c.l.b16 %v387
    %v1486 = vunpack.c.h.b16 %v387
    %v1487 = vunpack.c.l.b16 %v388
    %v1488 = vunpack.c.h.b16 %v388
    %v1489 = vunpack.c.l.b16 %v389
    %v1490 = vunpack.c.h.b16 %v389
    %v1491 = vunpack.c.l.b16 %v390
    %v1492 = vunpack.c.h.b16 %v390
    %v1493 = vunpack.c.l.b16 %v391
    %v1494 = vunpack.c.h.b16 %v391
    %v1495 = vunpack.c.l.b16 %v392
    %v1496 = vunpack.c.h.b16 %v392
    %v1497 = vunpack.c.l.b16 %v393
    %v1498 = vunpack.c.h.b16 %v393
    %v1499 = vunpack.c.l.b16 %v394
    %v1500 = vunpack.c.h.b16 %v394
    %v1501 = vunpack.c.l.b16 %v395
    %v1502 = vunpack.c.h.b16 %v395
    %v1503 = vunpack.c.l.b16 %v396
    %v1504 = vunpack.c.h.b16 %v396
    %v1505 = vunpack.c.l.b16 %v397
    %v1506 = vunpack.c.h.b16 %v397
    %v1507 = vunpack.c.l.b16 %v398
    %v1508 = vunpack.c.h.b16 %v398
    %v1509 = vunpack.c.l.b16 %v399
    %v1510 = vunpack.c.h.b16 %v399
    %v1511 = vunpack.c.l.b16 %v400
    %v1512 = vunpack.c.h.b16 %v400
    %v1513 = vunpack.c.l.b16 %v401
    %v1514 = vunpack.c.h.b16 %v401
    %v1515 = vunpack.c.l.b16 %v402
    %v1516 = vunpack.c.h.b16 %v402
    %v1517 = vunpack.c.l.b16 %v403
    %v1518 = vunpack.c.h.b16 %v403
    %v1519 = vunpack.c.l.b16 %v404
    %v1520 = vunpack.c.h.b16 %v404
    %v1521 = vunpack.c.l.b16 %v405
    %v1522 = vunpack.c.h.b16 %v405
    %v1523 = vunpack.c.l.b16 %v406
    %v1524 = vunpack.c.h.b16 %v406
    %v1525 = vunpack.c.l.b16 %v407
    %v1526 = vunpack.c.h.b16 %v407
    %v1527 = vunpack.c.l.b16 %v408
    %v1528 = vunpack.c.h.b16 %v408
    %v1529 = vunpack.c.l.b16 %v409
    %v1530 = vunpack.c.h.b16 %v409
    %v1531 = vunpack.c.l.b16 %v410
    %v1532 = vunpack.c.h.b16 %v410
    %v1533 = vunpack.c.l.b16 %v411
    %v1534 = vunpack.c.h.b16 %v411
    %v1535 = vunpack.c.l.b16 %v412
    %v1536 = vunpack.c.h.b16 %v412
    %v1537 = vunpack.c.l.b16 %v413
    %v1538 = vunpack.c.h.b16 %v413
    %v1539 = vunpack.c.l.b16 %v414
    %v1540 = vunpack.c.h.b16 %v414
    %v1541 = vunpack.c.l.b16 %v415
    %v1542 = vunpack.c.h.b16 %v415
    %v1543 = vunpack.c.l.b16 %v416
    %v1544 = vunpack.c.h.b16 %v416
    %v1545 = vunpack.c.l.b16 %v417
    %v1546 = vunpack.c.h.b16 %v417
    %v1547 = vunpack.c.l.b16 %v418
    %v1548 = vunpack.c.h.b16 %v418
    %v1549 = vunpack.c.l.b16 %v419
    %v1550 = vunpack.c.h.b16 %v419
    %v1551 = vunpack.c.l.b16 %v420
    %v1552 = vunpack.c.h.b16 %v420
    %v1553 = vunpack.c.l.b16 %v421
    %v1554 = vunpack.c.h.b16 %v421
    %v1555 = vunpack.c.l.b16 %v422
    %v1556 = vunpack.c.h.b16 %v422
    %v1557 = vunpack.c.l.b16 %v423
    %v1558 = vunpack.c.h.b16 %v423
    %v1559 = vunpack.c.l.b16 %v424
    %v1560 = vunpack.c.h.b16 %v424
    %v1561 = vunpack.c.l.b16 %v425
    %v1562 = vunpack.c.h.b16 %v425
    %v1563 = vunpack.c.l.b16 %v426
    %v1564 = vunpack.c.h.b16 %v426
    %v1565 = vunpack.c.l.b16 %v427
    %v1566 = vunpack.c.h.b16 %v427
    %v1567 = vunpack.c.l.b16 %v428
    %v1568 = vunpack.c.h.b16 %v428
    %v1569 = vunpack.c.l.b16 %v429
    %v1570 = vunpack.c.h.b16 %v429
    %v1571 = vunpack.c.l.b16 %v430
    %v1572 = vunpack.c.h.b16 %v430
    %v1573 = vunpack.c.l.b16 %v431
    %v1574 = vunpack.c.h.b16 %v431
    %v1575 = vunpack.c.l.b16 %v432
    %v1576 = vunpack.c.h.b16 %v432
    %v1577 = vunpack.c.l.b16 %v433
    %v1578 = vunpack.c.h.b16 %v433
    %v1579 = vunpack.c.l.b16 %v434
    %v1580 = vunpack.c.h.b16 %v434
    %v1581 = vunpack.c.l.b16 %v435
    %v1582 = vunpack.c.h.b16 %v435
    %v1583 = vunpack.c.l.b16 %v436
    %v1584 = vunpack.c.h.b16 %v436
    %v1585 = vunpack.c.l.b16 %v437
    %v1586 = vunpack.c.h.b16 %v437
    %v1587 = vunpack.c.l.b16 %v438
    %v1588 = vunpack.c.h.b16 %v438
    %v1589 = vunpack.c.l.b16 %v439
    %v1590 = vunpack.c.h.b16 %v439
    %v1591 = vunpack.c.l.b16 %v440
    %v1592 = vunpack.c.h.b16 %v440
    %v1593 = vunpack.c.l.b16 %v441
    %v1594 = vunpack.c.h.b16 %v441
    %v1595 = vunpack.c.l.b16 %v442
    %v1596 = vunpack.c.h.b16 %v442
    %v1597 = vunpack.c.l.b16 %v443
    %v1598 = vunpack.c.h.b16 %v443
    %v1599 = vunpack.c.l.b16 %v444
    %v1600 = vunpack.c.h.b16 %v444
    %v1601 = vunpack.c.l.b16 %v445
    %v1602 = vunpack.c.h.b16 %v445
    %v1603 = vunpack.c.l.b16 %v446
    %v1604 = vunpack.c.h.b16 %v446
    %v1605 = vunpack.c.l.b16 %v447
    %v1606 = vunpack.c.h.b16 %v447
    %v1607 = vunpack.c.l.b16 %v448
    %v1608 = vunpack.c.h.b16 %v448
    %v1609 = vunpack.c.l.b16 %v449
    %v1610 = vunpack.c.h.b16 %v449
    %v1611 = vunpack.c.l.b16 %v450
    %v1612 = vunpack.c.h.b16 %v450
    %v1613 = vunpack.c.l.b16 %v451
    %v1614 = vunpack.c.h.b16 %v451
    %v1615 = vunpack.c.l.b16 %v452
    %v1616 = vunpack.c.h.b16 %v452
    %v1617 = vunpack.c.l.b16 %v453
    %v1618 = vunpack.c.h.b16 %v453
    %v1619 = vunpack.c.l.b16 %v454
    %v1620 = vunpack.c.h.b16 %v454
    %v1621 = vunpack.c.l.b16 %v455
    %v1622 = vunpack.c.h.b16 %v455
    %v1623 = vunpack.c.l.b16 %v456
    %v1624 = vunpack.c.h.b16 %v456
    %v1625 = vunpack.c.l.b16 %v457
    %v1626 = vunpack.c.h.b16 %v457
    %v1627 = vunpack.c.l.b16 %v458
    %v1628 = vunpack.c.h.b16 %v458
    %v1629 = vunpack.c.l.b16 %v459
    %v1630 = vunpack.c.h.b16 %v459
    %v1631 = vunpack.c.l.b16 %v460
    %v1632 = vunpack.c.h.b16 %v460
    %v1633 = vunpack.c.l.b16 %v461
    %v1634 = vunpack.c.h.b16 %v461
    %v1635 = vunpack.c.l.b16 %v462
    %v1636 = vunpack.c.h.b16 %v462
    %v1637 = vunpack.c.l.b16 %v463
    %v1638 = vunpack.c.h.b16 %v463
    %v1639 = vunpack.c.l.b16 %v464
    %v1640 = vunpack.c.h.b16 %v464
    %v1641 = vunpack.c.l.b16 %v465
    %v1642 = vunpack.c.h.b16 %v465
    %v1643 = vunpack.c.l.b16 %v466
    %v1644 = vunpack.c.h.b16 %v466
    %v1645 = vunpack.c.l.b16 %v467
    %v1646 = vunpack.c.h.b16 %v467
    %v1647 = vunpack.c.l.b16 %v468
    %v1648 = vunpack.c.h.b16 %v468
    %v1649 = vunpack.c.l.b16 %v469
    %v1650 = vunpack.c.h.b16 %v469
    %v1651 = vunpack.c.l.b16 %v470
    %v1652 = vunpack.c.h.b16 %v470
    %v1653 = vunpack.c.l.b16 %v471
    %v1654 = vunpack.c.h.b16 %v471
    %v1655 = vunpack.c.l.b16 %v472
    %v1656 = vunpack.c.h.b16 %v472
    %v1657 = vunpack.c.l.b16 %v473
    %v1658 = vunpack.c.h.b16 %v473
    %v1659 = vunpack.c.l.b16 %v474
    %v1660 = vunpack.c.h.b16 %v474
    %v1661 = vunpack.c.l.b16 %v475
    %v1662 = vunpack.c.h.b16 %v475
    %v1663 = vunpack.c.l.b16 %v476
    %v1664 = vunpack.c.h.b16 %v476
    %v1665 = vunpack.c.l.b16 %v477
    %v1666 = vunpack.c.h.b16 %v477
    %v1667 = vunpack.c.l.b16 %v478
    %v1668 = vunpack.c.h.b16 %v478
    %v1669 = vunpack.c.l.b16 %v479
    %v1670 = vunpack.c.h.b16 %v479
    %v1671 = vunpack.c.l.b16 %v480
    %v1672 = vunpack.c.h.b16 %v480
    %v1673 = vunpack.c.l.b16 %v481
    %v1674 = vunpack.c.h.b16 %v481
    %v1675 = vunpack.c.l.b16 %v482
    %v1676 = vunpack.c.h.b16 %v482
    %v1677 = vunpack.c.l.b16 %v483
    %v1678 = vunpack.c.h.b16 %v483
    %v1679 = vunpack.c.l.b16 %v484
    %v1680 = vunpack.c.h.b16 %v484
    %v1681 = vunpack.c.l.b16 %v485
    %v1682 = vunpack.c.h.b16 %v485
    %v1683 = vunpack.c.l.b16 %v486
    %v1684 = vunpack.c.h.b16 %v486
    %v1685 = vunpack.c.l.b16 %v487
    %v1686 = vunpack.c.h.b16 %v487
    %v1687 = vunpack.c.l.b16 %v488
    %v1688 = vunpack.c.h.b16 %v488
    %v1689 = vunpack.c.l.b16 %v489
    %v1690 = vunpack.c.h.b16 %v489
    %v1691 = vunpack.c.l.b16 %v490
    %v1692 = vunpack.c.h.b16 %v490
    %v1693 = vunpack.c.l.b16 %v491
    %v1694 = vunpack.c.h.b16 %v491
    %v1695 = vunpack.c.l.b16 %v492
    %v1696 = vunpack.c.h.b16 %v492
    %v1697 = vunpack.c.l.b16 %v493
    %v1698 = vunpack.c.h.b16 %v493
    %v1699 = vunpack.c.l.b16 %v494
    %v1700 = vunpack.c.h.b16 %v494
    %v1701 = vunpack.c.l.b16 %v495
    %v1702 = vunpack.c.h.b16 %v495
    %v1703 = vunpack.c.l.b16 %v496
    %v1704 = vunpack.c.h.b16 %v496
    %v1705 = vunpack.c.l.b16 %v497
    %v1706 = vunpack.c.h.b16 %v497
    %v1707 = vunpack.c.l.b16 %v498
    %v1708 = vunpack.c.h.b16 %v498
    %v1709 = vunpack.c.l.b16 %v499
    %v1710 = vunpack.c.h.b16 %v499
    %v1711 = vunpack.c.l.b16 %v500
    %v1712 = vunpack.c.h.b16 %v500
    %v1713 = vunpack.c.l.b16 %v501
    %v1714 = vunpack.c.h.b16 %v501
    %v1715 = vunpack.c.l.b16 %v502
    %v1716 = vunpack.c.h.b16 %v502
    %v1717 = vunpack.c.l.b16 %v503
    %v1718 = vunpack.c.h.b16 %v503
    %v1719 = vunpack.c.l.b16 %v504
    %v1720 = vunpack.c.h.b16 %v504
    %v1721 = vpack.c.b16 %v957, %v953
    %v1722 = vpack.c.b16 %v958, %v954
    %v1723 = vpack.c.b16 %v959, %v955
    %v1724 = vpack.c.b16 %v960, %v956
    %v1725 = vpack.c.b16 %v965, %v961
    %v1726 = vpack.c.b16 %v966, %v962
    %v1727 = vpack.c.b16 %v967, %v963
    %v1728 = vpack.c.b16 %v968, %v964
    %v1729 = vpack.c.b16 %v973, %v969
    %v1730 = vpack.c.b16 %v974, %v970
    %v1731 = vpack.c.b16 %v975, %v971
    %v1732 = vpack.c.b16 %v976, %v972
    %v1733 = vpack.c.b16 %v981, %v977
    %v1734 = vpack.c.b16 %v982, %v978
    %v1735 = vpack.c.b16 %v983, %v979
    %v1736 = vpack.c.b16 %v984, %v980
    %v1737 = vpack.c.b16 %v989, %v985
    %v1738 = vpack.c.b16 %v990, %v986
    %v1739 = vpack.c.b16 %v991, %v987
    %v1740 = vpack.c.b16 %v992, %v988
    %v1741 = vpack.c.b16 %v997, %v993
    %v1742 = vpack.c.b16 %v998, %v994
    %v1743 = vpack.c.b16 %v999, %v995
    %v1744 = vpack.c.b16 %v1000, %v996
    %v1745 = vpack.c.b16 %v1005, %v1001
    %v1746 = vpack.c.b16 %v1006, %v1002
    %v1747 = vpack.c.b16 %v1007, %v1003
    %v1748 = vpack.c.b16 %v1008, %v1004
    %v1749 = vpack.c.b16 %v1013, %v1009
    %v1750 = vpack.c.b16 %v1014, %v1010
    %v1751 = vpack.c.b16 %v1015, %v1011
    %v1752 = vpack.c.b16 %v1016, %v1012
    %v1753 = vpack.c.b16 %v1021, %v1017
    %v1754 = vpack.c.b16 %v1022, %v1018
    %v1755 = vpack.c.b16 %v1023, %v1019
    %v1756 = vpack.c.b16 %v1024, %v1020
    %v1757 = vpack.c.b16 %v1029, %v1025
    %v1758 = vpack.c.b16 %v1030, %v1026
    %v1759 = vpack.c.b16 %v1031, %v1027
    %v1760 = vpack.c.b16 %v1032, %v1028
    %v1761 = vpack.c.b16 %v1037, %v1033
    %v1762 = vpack.c.b16 %v1038, %v1034
    %v1763 = vpack.c.b16 %v1039, %v1035
    %v1764 = vpack.c.b16 %v1040, %v1036
    %v1765 = vpack.c.b16 %v1045, %v1041
    %v1766 = vpack.c.b16 %v1046, %v1042
    %v1767 = vpack.c.b16 %v1047, %v1043
    %v1768 = vpack.c.b16 %v1048, %v1044
    %v1769 = vpack.c.b16 %v1053, %v1049
    %v1770 = vpack.c.b16 %v1054, %v1050
    %v1771 = vpack.c.b16 %v1055, %v1051
    %v1772 = vpack.c.b16 %v1056, %v1052
    %v1773 = vpack.c.b16 %v1061, %v1057
    %v1774 = vpack.c.b16 %v1062, %v1058
    %v1775 = vpack.c.b16 %v1063, %v1059
    %v1776 = vpack.c.b16 %v1064, %v1060
    %v1777 = vpack.c.b16 %v1069, %v1065
    %v1778 = vpack.c.b16 %v1070, %v1066
    %v1779 = vpack.c.b16 %v1071, %v1067
    %v1780 = vpack.c.b16 %v1072, %v1068
    %v1781 = vpack.c.b16 %v1077, %v1073
    %v1782 = vpack.c.b16 %v1078, %v1074
    %v1783 = vpack.c.b16 %v1079, %v1075
    %v1784 = vpack.c.b16 %v1080, %v1076
    %v1785 = vpack.c.b16 %v1085, %v1081
    %v1786 = vpack.c.b16 %v1086, %v1082
    %v1787 = vpack.c.b16 %v1087, %v1083
    %v1788 = vpack.c.b16 %v1088, %v1084
    %v1789 = vpack.c.b16 %v1093, %v1089
    %v1790 = vpack.c.b16 %v1094, %v1090
    %v1791 = vpack.c.b16 %v1095, %v1091
    %v1792 = vpack.c.b16 %v1096, %v1092
    %v1793 = vpack.c.b16 %v1101, %v1097
    %v1794 = vpack.c.b16 %v1102, %v1098
    %v1795 = vpack.c.b16 %v1103, %v1099
    %v1796 = vpack.c.b16 %v1104, %v1100
    %v1797 = vpack.c.b16 %v1109, %v1105
    %v1798 = vpack.c.b16 %v1110, %v1106
    %v1799 = vpack.c.b16 %v1111, %v1107
    %v1800 = vpack.c.b16 %v1112, %v1108
    %v1801 = vpack.c.b16 %v1117, %v1113
    %v1802 = vpack.c.b16 %v1118, %v1114
    %v1803 = vpack.c.b16 %v1119, %v1115
    %v1804 = vpack.c.b16 %v1120, %v1116
    %v1805 = vpack.c.b16 %v1125, %v1121
    %v1806 = vpack.c.b16 %v1126, %v1122
    %v1807 = vpack.c.b16 %v1127, %v1123
    %v1808 = vpack.c.b16 %v1128, %v1124
    %v1809 = vpack.c.b16 %v1133, %v1129
    %v1810 = vpack.c.b16 %v1134, %v1130
    %v1811 = vpack.c.b16 %v1135, %v1131
    %v1812 = vpack.c.b16 %v1136, %v1132
    %v1813 = vpack.c.b16 %v1141, %v1137
    %v1814 = vpack.c.b16 %v1142, %v1138
    %v1815 = vpack.c.b16 %v1143, %v1139
    %v1816 = vpack.c.b16 %v1144, %v1140
    %v1817 = vpack.c.b16 %v1149, %v1145
    %v1818 = vpack.c.b16 %v1150, %v1146
    %v1819 = vpack.c.b16 %v1151, %v1147
    %v1820 = vpack.c.b16 %v1152, %v1148
    %v1821 = vpack.c.b16 %v1157, %v1153
    %v1822 = vpack.c.b16 %v1158, %v1154
    %v1823 = vpack.c.b16 %v1159, %v1155
    %v1824 = vpack.c.b16 %v1160, %v1156
    %v1825 = vpack.c.b16 %v1165, %v1161
    %v1826 = vpack.c.b16 %v1166, %v1162
    %v1827 = vpack.c.b16 %v1167, %v1163
    %v1828 = vpack.c.b16 %v1168, %v1164
    %v1829 = vpack.c.b16 %v1173, %v1169
    %v1830 = vpack.c.b16 %v1174, %v1170
    %v1831 = vpack.c.b16 %v1175, %v1171
    %v1832 = vpack.c.b16 %v1176, %v1172
    %v1833 = vpack.c.b16 %v1181, %v1177
    %v1834 = vpack.c.b16 %v1182, %v1178
    %v1835 = vpack.c.b16 %v1183, %v1179
    %v1836 = vpack.c.b16 %v1184, %v1180
    %v1837 = vpack.c.b16 %v1189, %v1185
    %v1838 = vpack.c.b16 %v1190, %v1186
    %v1839 = vpack.c.b16 %v1191, %v1187
    %v1840 = vpack.c.b16 %v1192, %v1188
    %v1841 = vpack.c.b16 %v1197, %v1193
    %v1842 = vpack.c.b16 %v1198, %v1194
    %v1843 = vpack.c.b16 %v1199, %v1195
    %v1844 = vpack.c.b16 %v1200, %v1196
    %v1845 = vpack.c.b16 %v1205, %v1201
    %v1846 = vpack.c.b16 %v1206, %v1202
    %v1847 = vpack.c.b16 %v1207, %v1203
    %v1848 = vpack.c.b16 %v1208, %v1204
    %v1849 = vpack.c.b16 %v1213, %v1209
    %v1850 = vpack.c.b16 %v1214, %v1210
    %v1851 = vpack.c.b16 %v1215, %v1211
    %v1852 = vpack.c.b16 %v1216, %v1212
    %v1853 = vpack.c.b16 %v1221, %v1217
    %v1854 = vpack.c.b16 %v1222, %v1218
    %v1855 = vpack.c.b16 %v1223, %v1219
    %v1856 = vpack.c.b16 %v1224, %v1220
    %v1857 = vpack.c.b16 %v1229, %v1225
    %v1858 = vpack.c.b16 %v1230, %v1226
    %v1859 = vpack.c.b16 %v1231, %v1227
    %v1860 = vpack.c.b16 %v1232, %v1228
    %v1861 = vpack.c.b16 %v1237, %v1233
    %v1862 = vpack.c.b16 %v1238, %v1234
    %v1863 = vpack.c.b16 %v1239, %v1235
    %v1864 = vpack.c.b16 %v1240, %v1236
    %v1865 = vpack.c.b16 %v1245, %v1241
    %v1866 = vpack.c.b16 %v1246, %v1242
    %v1867 = vpack.c.b16 %v1247, %v1243
    %v1868 = vpack.c.b16 %v1248, %v1244
    %v1869 = vpack.c.b16 %v1253, %v1249
    %v1870 = vpack.c.b16 %v1254, %v1250
    %v1871 = vpack.c.b16 %v1255, %v1251
    %v1872 = vpack.c.b16 %v1256, %v1252
    %v1873 = vpack.c.b16 %v1261, %v1257
    %v1874 = vpack.c.b16 %v1262, %v1258
    %v1875 = vpack.c.b16 %v1263, %v1259
    %v1876 = vpack.c.b16 %v1264, %v1260
    %v1877 = vpack.c.b16 %v1269, %v1265
    %v1878 = vpack.c.b16 %v1270, %v1266
    %v1879 = vpack.c.b16 %v1271, %v1267
    %v1880 = vpack.c.b16 %v1272, %v1268
    %v1881 = vpack.c.b16 %v1277, %v1273
    %v1882 = vpack.c.b16 %v1278, %v1274
    %v1883 = vpack.c.b16 %v1279, %v1275
    %v1884 = vpack.c.b16 %v1280, %v1276
    %v1885 = vpack.c.b16 %v1285, %v1281
    %v1886 = vpack.c.b16 %v1286, %v1282
    %v1887 = vpack.c.b16 %v1287, %v1283
    %v1888 = vpack.c.b16 %v1288, %v1284
    %v1889 = vpack.c.b16 %v1293, %v1289
    %v1890 = vpack.c.b16 %v1294, %v1290
    %v1891 = vpack.c.b16 %v1295, %v1291
    %v1892 = vpack.c.b16 %v1296, %v1292
    %v1893 = vpack.c.b16 %v1301, %v1297
    %v1894 = vpack.c.b16 %v1302, %v1298
    %v1895 = vpack.c.b16 %v1303, %v1299
    %v1896 = vpack.c.b16 %v1304, %v1300
    %v1897 = vpack.c.b16 %v1309, %v1305
    %v1898 = vpack.c.b16 %v1310, %v1306
    %v1899 = vpack.c.b16 %v1311, %v1307
    %v1900 = vpack.c.b16 %v1312, %v1308
    %v1901 = vpack.c.b16 %v1317, %v1313
    %v1902 = vpack.c.b16 %v1318, %v1314
    %v1903 = vpack.c.b16 %v1319, %v1315
    %v1904 = vpack.c.b16 %v1320, %v1316
    %v1905 = vpack.c.b16 %v1325, %v1321
    %v1906 = vpack.c.b16 %v1326, %v1322
    %v1907 = vpack.c.b16 %v1327, %v1323
    %v1908 = vpack.c.b16 %v1328, %v1324
    %v1909 = vpack.c.b16 %v1333, %v1329
    %v1910 = vpack.c.b16 %v1334, %v1330
    %v1911 = vpack.c.b16 %v1335, %v1331
    %v1912 = vpack.c.b16 %v1336, %v1332
    %v1913 = vpack.c.b16 %v1341, %v1337
    %v1914 = vpack.c.b16 %v1342, %v1338
    %v1915 = vpack.c.b16 %v1343, %v1339
    %v1916 = vpack.c.b16 %v1344, %v1340
    %v1917 = vpack.c.b16 %v1349, %v1345
    %v1918 = vpack.c.b16 %v1350, %v1346
    %v1919 = vpack.c.b16 %v1351, %v1347
    %v1920 = vpack.c.b16 %v1352, %v1348
    %v1921 = vpack.c.b16 %v1357, %v1353
    %v1922 = vpack.c.b16 %v1358, %v1354
    %v1923 = vpack.c.b16 %v1359, %v1355
    %v1924 = vpack.c.b16 %v1360, %v1356
    %v1925 = vpack.c.b16 %v1365, %v1361
    %v1926 = vpack.c.b16 %v1366, %v1362
    %v1927 = vpack.c.b16 %v1367, %v1363
    %v1928 = vpack.c.b16 %v1368, %v1364
    %v1929 = vpack.c.b16 %v1373, %v1369
    %v1930 = vpack.c.b16 %v1374, %v1370
    %v1931 = vpack.c.b16 %v1375, %v1371
    %v1932 = vpack.c.b16 %v1376, %v1372
    %v1933 = vpack.c.b16 %v1381, %v1377
    %v1934 = vpack.c.b16 %v1382, %v1378
    %v1935 = vpack.c.b16 %v1383, %v1379
    %v1936 = vpack.c.b16 %v1384, %v1380
    %v1937 = vpack.c.b16 %v1389, %v1385
    %v1938 = vpack.c.b16 %v1390, %v1386
    %v1939 = vpack.c.b16 %v1391, %v1387
    %v1940 = vpack.c.b16 %v1392, %v1388
    %v1941 = vpack.c.b16 %v1397, %v1393
    %v1942 = vpack.c.b16 %v1398, %v1394
    %v1943 = vpack.c.b16 %v1399, %v1395
    %v1944 = vpack.c.b16 %v1400, %v1396
    %v1945 = vpack.c.b16 %v1405, %v1401
    %v1946 = vpack.c.b16 %v1406, %v1402
    %v1947 = vpack.c.b16 %v1407, %v1403
    %v1948 = vpack.c.b16 %v1408, %v1404
    %v1949 = vpack.c.b16 %v1413, %v1409
    %v1950 = vpack.c.b16 %v1414, %v1410
    %v1951 = vpack.c.b16 %v1415, %v1411
    %v1952 = vpack.c.b16 %v1416, %v1412
    %v1953 = vpack.c.b16 %v1421, %v1417
    %v1954 = vpack.c.b16 %v1422, %v1418
    %v1955 = vpack.c.b16 %v1423, %v1419
    %v1956 = vpack.c.b16 %v1424, %v1420
    %v1957 = vpack.c.b16 %v1429, %v1425
    %v1958 = vpack.c.b16 %v1430, %v1426
    %v1959 = vpack.c.b16 %v1431, %v1427
    %v1960 = vpack.c.b16 %v1432, %v1428
    %v1961 = vpack.c.b16 %v1437, %v1433
    %v1962 = vpack.c.b16 %v1438, %v1434
    %v1963 = vpack.c.b16 %v1439, %v1435
    %v1964 = vpack.c.b16 %v1440, %v1436
    %v1965 = vpack.c.b16 %v1445, %v1441
    %v1966 = vpack.c.b16 %v1446, %v1442
    %v1967 = vpack.c.b16 %v1447, %v1443
    %v1968 = vpack.c.b16 %v1448, %v1444
    %v1969 = vpack.c.b16 %v1453, %v1449
    %v1970 = vpack.c.b16 %v1454, %v1450
    %v1971 = vpack.c.b16 %v1455, %v1451
    %v1972 = vpack.c.b16 %v1456, %v1452
    %v1973 = vpack.c.b16 %v1461, %v1457
    %v1974 = vpack.c.b16 %v1462, %v1458
    %v1975 = vpack.c.b16 %v1463, %v1459
    %v1976 = vpack.c.b16 %v1464, %v1460
    %v1977 = vpack.c.b16 %v1469, %v1465
    %v1978 = vpack.c.b16 %v1470, %v1466
    %v1979 = vpack.c.b16 %v1471, %v1467
    %v1980 = vpack.c.b16 %v1472, %v1468
    %v1981 = vpack.c.b16 %v1477, %v1473
    %v1982 = vpack.c.b16 %v1478, %v1474
    %v1983 = vpack.c.b16 %v1479, %v1475
    %v1984 = vpack.c.b16 %v1480, %v1476
    %v1985 = vpack.c.b16 %v1485, %v1481
    %v1986 = vpack.c.b16 %v1486, %v1482
    %v1987 = vpack.c.b16 %v1487, %v1483
    %v1988 = vpack.c.b16 %v1488, %v1484
    %v1989 = vpack.c.b16 %v1493, %v1489
    %v1990 = vpack.c.b16 %v1494, %v1490
    %v1991 = vpack.c.b16 %v1495, %v1491
    %v1992 = vpack.c.b16 %v1496, %v1492
    %v1993 = vpack.c.b16 %v1501, %v1497
    %v1994 = vpack.c.b16 %v1502, %v1498
    %v1995 = vpack.c.b16 %v1503, %v1499
    %v1996 = vpack.c.b16 %v1504, %v1500
    %v1997 = vpack.c.b16 %v1509, %v1505
    %v1998 = vpack.c.b16 %v1510, %v1506
    %v1999 = vpack.c.b16 %v1511, %v1507
    %v2000 = vpack.c.b16 %v1512, %v1508
    %v2001 = vpack.c.b16 %v1517, %v1513
    %v2002 = vpack.c.b16 %v1518, %v1514
    %v2003 = vpack.c.b16 %v1519, %v1515
    %v2004 = vpack.c.b16 %v1520, %v1516
    %v2005 = vpack.c.b16 %v1525, %v1521
    %v2006 = vpack.c.b16 %v1526, %v1522
    %v2007 = vpack.c.b16 %v1527, %v1523
    %v2008 = vpack.c.b16 %v1528, %v1524
    %v2009 = vpack.c.b16 %v1533, %v1529
    %v2010 = vpack.c.b16 %v1534, %v1530
    %v2011 = vpack.c.b16 %v1535, %v1531
    %v2012 = vpack.c.b16 %v1536, %v1532
    %v2013 = vpack.c.b16 %v1541, %v1537
    %v2014 = vpack.c.b16 %v1542, %v1538
    %v2015 = vpack.c.b16 %v1543, %v1539
    %v2016 = vpack.c.b16 %v1544, %v1540
    %v2017 = vpack.c.b16 %v1549, %v1545
    %v2018 = vpack.c.b16 %v1550, %v1546
    %v2019 = vpack.c.b16 %v1551, %v1547
    %v2020 = vpack.c.b16 %v1552, %v1548
    %v2021 = vpack.c.b16 %v1557, %v1553
    %v2022 = vpack.c.b16 %v1558, %v1554
    %v2023 = vpack.c.b16 %v1559, %v1555
    %v2024 = vpack.c.b16 %v1560, %v1556
    %v2025 = vpack.c.b16 %v1565, %v1561
    %v2026 = vpack.c.b16 %v1566, %v1562
    %v2027 = vpack.c.b16 %v1567, %v1563
    %v2028 = vpack.c.b16 %v1568, %v1564
    %v2029 = vpack.c.b16 %v1573, %v1569
    %v2030 = vpack.c.b16 %v1574, %v1570
    %v2031 = vpack.c.b16 %v1575, %v1571
    %v2032 = vpack.c.b16 %v1576, %v1572
    %v2033 = vpack.c.b16 %v1581, %v1577
    %v2034 = vpack.c.b16 %v1582, %v1578
    %v2035 = vpack.c.b16 %v1583, %v1579
    %v2036 = vpack.c.b16 %v1584, %v1580
    %v2037 = vpack.c.b16 %v1589, %v1585
    %v2038 = vpack.c.b16 %v1590, %v1586
    %v2039 = vpack.c.b16 %v1591, %v1587
    %v2040 = vpack.c.b16 %v1592, %v1588
    %v2041 = vpack.c.b16 %v1597, %v1593
    %v2042 = vpack.c.b16 %v1598, %v1594
    %v2043 = vpack.c.b16 %v1599, %v1595
    %v2044 = vpack.c.b16 %v1600, %v1596
    %v2045 = vpack.c.b16 %v1605, %v1601
    %v2046 = vpack.c.b16 %v1606, %v1602
    %v2047 = vpack.c.b16 %v1607, %v1603
    %v2048 = vpack.c.b16 %v1608, %v1604
    %v2049 = vpack.c.b16 %v1613, %v1609
    %v2050 = vpack.c.b16 %v1614, %v1610
    %v2051 = vpack.c.b16 %v1615, %v1611
    %v2052 = vpack.c.b16 %v1616, %v1612
    %v2053 = vpack.c.b16 %v1621, %v1617
    %v2054 = vpack.c.b16 %v1622, %v1618
    %v2055 = vpack.c.b16 %v1623, %v1619
    %v2056 = vpack.c.b16 %v1624, %v1620
    %v2057 = vpack.c.b16 %v1629, %v1625
    %v2058 = vpack.c.b16 %v1630, %v1626
    %v2059 = vpack.c.b16 %v1631, %v1627
    %v2060 = vpack.c.b16 %v1632, %v1628
    %v2061 = vpack.c.b16 %v1637, %v1633
    %v2062 = vpack.c.b16 %v1638, %v1634
    %v2063 = vpack.c.b16 %v1639, %v1635
    %v2064 = vpack.c.b16 %v1640, %v1636
    %v2065 = vpack.c.b16 %v1645, %v1641
    %v2066 = vpack.c.b16 %v1646, %v1642
    %v2067 = vpack.c.b16 %v1647, %v1643
    %v2068 = vpack.c.b16 %v1648, %v1644
    %v2069 = vpack.c.b16 %v1653, %v1649
    %v2070 = vpack.c.b16 %v1654, %v1650
    %v2071 = vpack.c.b16 %v1655, %v1651
    %v2072 = vpack.c.b16 %v1656, %v1652
    %v2073 = vpack.c.b16 %v1661, %v1657
    %v2074 = vpack.c.b16 %v1662, %v1658
    %v2075 = vpack.c.b16 %v1663, %v1659
    %v2076 = vpack.c.b16 %v1664, %v1660
    %v2077 = vpack.c.b16 %v1669, %v1665
    %v2078 = vpack.c.b16 %v1670, %v1666
    %v2079 = vpack.c.b16 %v1671, %v1667
    %v2080 = vpack.c.b16 %v1672, %v1668
    %v2081 = vpack.c.b16 %v1677, %v1673
    %v2082 = vpack.c.b16 %v1678, %v1674
    %v2083 = vpack.c.b16 %v1679, %v1675
    %v2084 = vpack.c.b16 %v1680, %v1676
    %v2085 = vpack.c.b16 %v1685, %v1681
    %v2086 = vpack.c.b16 %v1686, %v1682
    %v2087 = vpack.c.b16 %v1687, %v1683
    %v2088 = vpack.c.b16 %v1688, %v1684
    %v2089 = vpack.c.b16 %v1693, %v1689
    %v2090 = vpack.c.b16 %v1694, %v1690
    %v2091 = vpack.c.b16 %v1695, %v1691
    %v2092 = vpack.c.b16 %v1696, %v1692
    %v2093 = vpack.c.b16 %v1701, %v1697
    %v2094 = vpack.c.b16 %v1702, %v1698
    %v2095 = vpack.c.b16 %v1703, %v1699
    %v2096 = vpack.c.b16 %v1704, %v1700
    %v2097 = vpack.c.b16 %v1709, %v1705
    %v2098 = vpack.c.b16 %v1710, %v1706
    %v2099 = vpack.c.b16 %v1711, %v1707
    %v2100 = vpack.c.b16 %v1712, %v1708
    %v2101 = vpack.c.b16 %v1717, %v1713
    %v2102 = vpack.c.b16 %v1718, %v1714
    %v2103 = vpack.c.b16 %v1719, %v1715
    %v2104 = vpack.c.b16 %v1720, %v1716
    %2489 = vmatprep.subr.bf16.mxu0 %v1750
    %2490 = vmatpush1.bf16.msra.mxu0 %v1749
    %2491 = vmatprep.subr.bf16.mxu0 %v1746
    %2492 = vmatpush1.bf16.msra.mxu0 %v1745
    %2493 = vmatprep.subr.bf16.mxu0 %v1742
    %2494 = vmatpush1.bf16.msra.mxu0 %v1741
    %2495 = vmatprep.subr.bf16.mxu0 %v1738
    %2496 = vmatpush1.bf16.msra.mxu0 %v1737
    %2497 = vmatprep.subr.bf16.mxu0 %v1734
    %2498 = vmatpush1.bf16.msra.mxu0 %v1733
    %2499 = vmatprep.subr.bf16.mxu0 %v1730
    %2500 = vmatpush1.bf16.msra.mxu0 %v1729
    %2501 = vmatprep.subr.bf16.mxu0 %v1726
    %2502 = vmatpush1.bf16.msra.mxu0 %v1725
    %2503 = vmatprep.subr.bf16.mxu0 %v1722
    %2504 = vmatpush1.bf16.msra.mxu0 %v1721
    %2505 = vmatprep.subr.bf16.mxu0 %v1782
    %2506 = vmatpush2.bf16.msra.mxu0 %v1781
    %2507 = vmatprep.subr.bf16.mxu0 %v1778
    %2508 = vmatpush2.bf16.msra.mxu0 %v1777
    %2509 = vmatprep.subr.bf16.mxu0 %v1774
    %2510 = vmatpush2.bf16.msra.mxu0 %v1773
    %2511 = vmatprep.subr.bf16.mxu0 %v1770
    %2512 = vmatpush2.bf16.msra.mxu0 %v1769
    %2513 = vmatprep.subr.bf16.mxu0 %v1766
    %2514 = vmatpush2.bf16.msra.mxu0 %v1765
    %2515 = vmatprep.subr.bf16.mxu0 %v1762
    %2516 = vmatpush2.bf16.msra.mxu0 %v1761
    %2517 = vmatprep.subr.bf16.mxu0 %v1758
    %2518 = vmatpush2.bf16.msra.mxu0 %v1757
    %2519 = vmatprep.subr.bf16.mxu0 %v1754
    %2520 = vmatpush2.bf16.msra.mxu0 %v1753
    %2521 = vmatprep.mubr.bf16.mxu0 %v546
    %2522 = vmatmul.mubr.bf16.gmra.mxu0 %v545
    %v2523 = vpop.f32.mrf.mxu0
    %v2524 = vadd.f32 %v510, %v2523
    %v2525 = vpop.f32.mrf.mxu0
    %v2526 = vadd.f32 %v514, %v2525
    %v2527 = vpop.f32.mrf.mxu0
    %v2528 = vpop.f32.mrf.mxu0
    %2529 = vdwg.mxu0
    %2530 = vmatprep.subr.bf16.mxu0 %v1814
    %2531 = vmatpush1.bf16.msra.mxu0 %v1813
    %2532 = vmatprep.subr.bf16.mxu0 %v1810
    %2533 = vmatpush1.bf16.msra.mxu0 %v1809
    %2534 = vmatprep.subr.bf16.mxu0 %v1806
    %2535 = vmatpush1.bf16.msra.mxu0 %v1805
    %2536 = vmatprep.subr.bf16.mxu0 %v1802
    %2537 = vmatpush1.bf16.msra.mxu0 %v1801
    %2538 = vmatprep.subr.bf16.mxu0 %v1798
    %2539 = vmatpush1.bf16.msra.mxu0 %v1797
    %2540 = vmatprep.subr.bf16.mxu0 %v1794
    %2541 = vmatpush1.bf16.msra.mxu0 %v1793
    %2542 = vmatprep.subr.bf16.mxu0 %v1790
    %2543 = vmatpush1.bf16.msra.mxu0 %v1789
    %2544 = vmatprep.subr.bf16.mxu0 %v1786
    %2545 = vmatpush1.bf16.msra.mxu0 %v1785
    %2546 = vmatprep.subr.bf16.mxu0 %v1846
    %2547 = vmatpush2.bf16.msra.mxu0 %v1845
    %2548 = vmatprep.subr.bf16.mxu0 %v1842
    %2549 = vmatpush2.bf16.msra.mxu0 %v1841
    %2550 = vmatprep.subr.bf16.mxu0 %v1838
    %2551 = vmatpush2.bf16.msra.mxu0 %v1837
    %2552 = vmatprep.subr.bf16.mxu0 %v1834
    %2553 = vmatpush2.bf16.msra.mxu0 %v1833
    %2554 = vmatprep.subr.bf16.mxu0 %v1830
    %2555 = vmatpush2.bf16.msra.mxu0 %v1829
    %2556 = vmatprep.subr.bf16.mxu0 %v1826
    %2557 = vmatpush2.bf16.msra.mxu0 %v1825
    %2558 = vmatprep.subr.bf16.mxu0 %v1822
    %2559 = vmatpush2.bf16.msra.mxu0 %v1821
    %2560 = vmatprep.subr.bf16.mxu0 %v1818
    %2561 = vmatpush2.bf16.msra.mxu0 %v1817
    %2562 = vmatprep.mubr.bf16.mxu0 %v548
    %2563 = vmatmul.mubr.bf16.gmra.mxu0 %v547
    %v2564 = vpop.f32.mrf.mxu0
    %v2565 = vadd.f32 %v2524, %v2564
    %v2566 = vpop.f32.mrf.mxu0
    %v2567 = vadd.f32 %v2526, %v2566
    %v2568 = vpop.f32.mrf.mxu0
    %v2569 = vpop.f32.mrf.mxu0
    %2570 = vdwg.mxu0
    %2571 = vmatprep.subr.bf16.mxu0 %v1878
    %2572 = vmatpush1.bf16.msra.mxu0 %v1877
    %2573 = vmatprep.subr.bf16.mxu0 %v1874
    %2574 = vmatpush1.bf16.msra.mxu0 %v1873
    %2575 = vmatprep.subr.bf16.mxu0 %v1870
    %2576 = vmatpush1.bf16.msra.mxu0 %v1869
    %2577 = vmatprep.subr.bf16.mxu0 %v1866
    %2578 = vmatpush1.bf16.msra.mxu0 %v1865
    %2579 = vmatprep.subr.bf16.mxu0 %v1862
    %2580 = vmatpush1.bf16.msra.mxu0 %v1861
    %2581 = vmatprep.subr.bf16.mxu0 %v1858
    %2582 = vmatpush1.bf16.msra.mxu0 %v1857
    %2583 = vmatprep.subr.bf16.mxu0 %v1854
    %2584 = vmatpush1.bf16.msra.mxu0 %v1853
    %2585 = vmatprep.subr.bf16.mxu0 %v1850
    %2586 = vmatpush1.bf16.msra.mxu0 %v1849
    %2587 = vmatprep.subr.bf16.mxu0 %v1910
    %2588 = vmatpush2.bf16.msra.mxu0 %v1909
    %2589 = vmatprep.subr.bf16.mxu0 %v1906
    %2590 = vmatpush2.bf16.msra.mxu0 %v1905
    %2591 = vmatprep.subr.bf16.mxu0 %v1902
    %2592 = vmatpush2.bf16.msra.mxu0 %v1901
    %2593 = vmatprep.subr.bf16.mxu0 %v1898
    %2594 = vmatpush2.bf16.msra.mxu0 %v1897
    %2595 = vmatprep.subr.bf16.mxu0 %v1894
    %2596 = vmatpush2.bf16.msra.mxu0 %v1893
    %2597 = vmatprep.subr.bf16.mxu0 %v1890
    %2598 = vmatpush2.bf16.msra.mxu0 %v1889
    %2599 = vmatprep.subr.bf16.mxu0 %v1886
    %2600 = vmatpush2.bf16.msra.mxu0 %v1885
    %2601 = vmatprep.subr.bf16.mxu0 %v1882
    %2602 = vmatpush2.bf16.msra.mxu0 %v1881
    %2603 = vmatprep.mubr.bf16.mxu0 %v550
    %2604 = vmatmul.mubr.bf16.gmra.mxu0 %v549
    %v2605 = vpop.f32.mrf.mxu0
    %v2606 = vadd.f32 %v2565, %v2605
    %v2607 = vpop.f32.mrf.mxu0
    %v2608 = vadd.f32 %v2567, %v2607
    %v2609 = vpop.f32.mrf.mxu0
    %v2610 = vpop.f32.mrf.mxu0
    %2611 = vdwg.mxu0
    %2612 = vmatprep.subr.bf16.mxu0 %v1942
    %2613 = vmatpush1.bf16.msra.mxu0 %v1941
    %2614 = vmatprep.subr.bf16.mxu0 %v1938
    %2615 = vmatpush1.bf16.msra.mxu0 %v1937
    %2616 = vmatprep.subr.bf16.mxu0 %v1934
    %2617 = vmatpush1.bf16.msra.mxu0 %v1933
    %2618 = vmatprep.subr.bf16.mxu0 %v1930
    %2619 = vmatpush1.bf16.msra.mxu0 %v1929
    %2620 = vmatprep.subr.bf16.mxu0 %v1926
    %2621 = vmatpush1.bf16.msra.mxu0 %v1925
    %2622 = vmatprep.subr.bf16.mxu0 %v1922
    %2623 = vmatpush1.bf16.msra.mxu0 %v1921
    %2624 = vmatprep.subr.bf16.mxu0 %v1918
    %2625 = vmatpush1.bf16.msra.mxu0 %v1917
    %2626 = vmatprep.subr.bf16.mxu0 %v1914
    %2627 = vmatpush1.bf16.msra.mxu0 %v1913
    %2628 = vmatprep.subr.bf16.mxu0 %v1974
    %2629 = vmatpush2.bf16.msra.mxu0 %v1973
    %2630 = vmatprep.subr.bf16.mxu0 %v1970
    %2631 = vmatpush2.bf16.msra.mxu0 %v1969
    %2632 = vmatprep.subr.bf16.mxu0 %v1966
    %2633 = vmatpush2.bf16.msra.mxu0 %v1965
    %2634 = vmatprep.subr.bf16.mxu0 %v1962
    %2635 = vmatpush2.bf16.msra.mxu0 %v1961
    %2636 = vmatprep.subr.bf16.mxu0 %v1958
    %2637 = vmatpush2.bf16.msra.mxu0 %v1957
    %2638 = vmatprep.subr.bf16.mxu0 %v1954
    %2639 = vmatpush2.bf16.msra.mxu0 %v1953
    %2640 = vmatprep.subr.bf16.mxu0 %v1950
    %2641 = vmatpush2.bf16.msra.mxu0 %v1949
    %2642 = vmatprep.subr.bf16.mxu0 %v1946
    %2643 = vmatpush2.bf16.msra.mxu0 %v1945
    %2644 = vmatprep.mubr.bf16.mxu0 %v552
    %2645 = vmatmul.mubr.bf16.gmra.mxu0 %v551
    %v2646 = vpop.f32.mrf.mxu0
    %v2647 = vadd.f32 %v2606, %v2646
    %v2648 = vpop.f32.mrf.mxu0
    %v2649 = vadd.f32 %v2608, %v2648
    %v2650 = vpop.f32.mrf.mxu0
    %v2651 = vpop.f32.mrf.mxu0
    %2652 = vdwg.mxu0
    %2653 = vmatprep.subr.bf16.mxu0 %v2006
    %2654 = vmatpush1.bf16.msra.mxu0 %v2005
    %2655 = vmatprep.subr.bf16.mxu0 %v2002
    %2656 = vmatpush1.bf16.msra.mxu0 %v2001
    %2657 = vmatprep.subr.bf16.mxu0 %v1998
    %2658 = vmatpush1.bf16.msra.mxu0 %v1997
    %2659 = vmatprep.subr.bf16.mxu0 %v1994
    %2660 = vmatpush1.bf16.msra.mxu0 %v1993
    %2661 = vmatprep.subr.bf16.mxu0 %v1990
    %2662 = vmatpush1.bf16.msra.mxu0 %v1989
    %2663 = vmatprep.subr.bf16.mxu0 %v1986
    %2664 = vmatpush1.bf16.msra.mxu0 %v1985
    %2665 = vmatprep.subr.bf16.mxu0 %v1982
    %2666 = vmatpush1.bf16.msra.mxu0 %v1981
    %2667 = vmatprep.subr.bf16.mxu0 %v1978
    %2668 = vmatpush1.bf16.msra.mxu0 %v1977
    %2669 = vmatprep.subr.bf16.mxu0 %v2038
    %2670 = vmatpush2.bf16.msra.mxu0 %v2037
    %2671 = vmatprep.subr.bf16.mxu0 %v2034
    %2672 = vmatpush2.bf16.msra.mxu0 %v2033
    %2673 = vmatprep.subr.bf16.mxu0 %v2030
    %2674 = vmatpush2.bf16.msra.mxu0 %v2029
    %2675 = vmatprep.subr.bf16.mxu0 %v2026
    %2676 = vmatpush2.bf16.msra.mxu0 %v2025
    %2677 = vmatprep.subr.bf16.mxu0 %v2022
    %2678 = vmatpush2.bf16.msra.mxu0 %v2021
    %2679 = vmatprep.subr.bf16.mxu0 %v2018
    %2680 = vmatpush2.bf16.msra.mxu0 %v2017
    %2681 = vmatprep.subr.bf16.mxu0 %v2014
    %2682 = vmatpush2.bf16.msra.mxu0 %v2013
    %2683 = vmatprep.subr.bf16.mxu0 %v2010
    %2684 = vmatpush2.bf16.msra.mxu0 %v2009
    %2685 = vmatprep.mubr.bf16.mxu0 %v554
    %2686 = vmatmul.mubr.bf16.gmra.mxu0 %v553
    %v2687 = vpop.f32.mrf.mxu0
    %v2688 = vadd.f32 %v2647, %v2687
    %v2689 = vpop.f32.mrf.mxu0
    %v2690 = vadd.f32 %v2649, %v2689
    %v2691 = vpop.f32.mrf.mxu0
    %v2692 = vpop.f32.mrf.mxu0
    %2693 = vdwg.mxu0
    %2694 = vmatprep.subr.bf16.mxu0 %v2070
    %2695 = vmatpush1.bf16.msra.mxu0 %v2069
    %2696 = vmatprep.subr.bf16.mxu0 %v2066
    %2697 = vmatpush1.bf16.msra.mxu0 %v2065
    %2698 = vmatprep.subr.bf16.mxu0 %v2062
    %2699 = vmatpush1.bf16.msra.mxu0 %v2061
    %2700 = vmatprep.subr.bf16.mxu0 %v2058
    %2701 = vmatpush1.bf16.msra.mxu0 %v2057
    %2702 = vmatprep.subr.bf16.mxu0 %v2054
    %2703 = vmatpush1.bf16.msra.mxu0 %v2053
    %2704 = vmatprep.subr.bf16.mxu0 %v2050
    %2705 = vmatpush1.bf16.msra.mxu0 %v2049
    %2706 = vmatprep.subr.bf16.mxu0 %v2046
    %2707 = vmatpush1.bf16.msra.mxu0 %v2045
    %2708 = vmatprep.subr.bf16.mxu0 %v2042
    %2709 = vmatpush1.bf16.msra.mxu0 %v2041
    %2710 = vmatprep.subr.bf16.mxu0 %v2102
    %2711 = vmatpush2.bf16.msra.mxu0 %v2101
    %2712 = vmatprep.subr.bf16.mxu0 %v2098
    %2713 = vmatpush2.bf16.msra.mxu0 %v2097
    %2714 = vmatprep.subr.bf16.mxu0 %v2094
    %2715 = vmatpush2.bf16.msra.mxu0 %v2093
    %2716 = vmatprep.subr.bf16.mxu0 %v2090
    %2717 = vmatpush2.bf16.msra.mxu0 %v2089
    %2718 = vmatprep.subr.bf16.mxu0 %v2086
    %2719 = vmatpush2.bf16.msra.mxu0 %v2085
    %2720 = vmatprep.subr.bf16.mxu0 %v2082
    %2721 = vmatpush2.bf16.msra.mxu0 %v2081
    %2722 = vmatprep.subr.bf16.mxu0 %v2078
    %2723 = vmatpush2.bf16.msra.mxu0 %v2077
    %2724 = vmatprep.subr.bf16.mxu0 %v2074
    %2725 = vmatpush2.bf16.msra.mxu0 %v2073
    %2726 = vmatprep.mubr.bf16.mxu0 %v556
    %2727 = vmatmul.mubr.bf16.gmra.mxu0 %v555
    %v2728 = vpop.f32.mrf.mxu0
    %v2729 = vadd.f32 %v2688, %v2728
    %v2730 = vpop.f32.mrf.mxu0
    %v2731 = vadd.f32 %v2690, %v2730
    %v2732 = vpop.f32.mrf.mxu0
    %v2733 = vpop.f32.mrf.mxu0
    %2734 = vdwg.mxu0
    %2735 = vmatprep.subr.bf16.mxu0 %v1752
    %2736 = vmatpush1.bf16.msra.mxu0 %v1751
    %2737 = vmatprep.subr.bf16.mxu0 %v1748
    %2738 = vmatpush1.bf16.msra.mxu0 %v1747
    %2739 = vmatprep.subr.bf16.mxu0 %v1744
    %2740 = vmatpush1.bf16.msra.mxu0 %v1743
    %2741 = vmatprep.subr.bf16.mxu0 %v1740
    %2742 = vmatpush1.bf16.msra.mxu0 %v1739
    %2743 = vmatprep.subr.bf16.mxu0 %v1736
    %2744 = vmatpush1.bf16.msra.mxu0 %v1735
    %2745 = vmatprep.subr.bf16.mxu0 %v1732
    %2746 = vmatpush1.bf16.msra.mxu0 %v1731
    %2747 = vmatprep.subr.bf16.mxu0 %v1728
    %2748 = vmatpush1.bf16.msra.mxu0 %v1727
    %2749 = vmatprep.subr.bf16.mxu0 %v1724
    %2750 = vmatpush1.bf16.msra.mxu0 %v1723
    %2751 = vmatprep.subr.bf16.mxu0 %v1784
    %2752 = vmatpush2.bf16.msra.mxu0 %v1783
    %2753 = vmatprep.subr.bf16.mxu0 %v1780
    %2754 = vmatpush2.bf16.msra.mxu0 %v1779
    %2755 = vmatprep.subr.bf16.mxu0 %v1776
    %2756 = vmatpush2.bf16.msra.mxu0 %v1775
    %2757 = vmatprep.subr.bf16.mxu0 %v1772
    %2758 = vmatpush2.bf16.msra.mxu0 %v1771
    %2759 = vmatprep.subr.bf16.mxu0 %v1768
    %2760 = vmatpush2.bf16.msra.mxu0 %v1767
    %2761 = vmatprep.subr.bf16.mxu0 %v1764
    %2762 = vmatpush2.bf16.msra.mxu0 %v1763
    %2763 = vmatprep.subr.bf16.mxu0 %v1760
    %2764 = vmatpush2.bf16.msra.mxu0 %v1759
    %2765 = vmatprep.subr.bf16.mxu0 %v1756
    %2766 = vmatpush2.bf16.msra.mxu0 %v1755
    %2767 = vmatprep.mubr.bf16.mxu0 %v546
    %2768 = vmatmul.mubr.bf16.gmra.mxu0 %v545
    %v2769 = vpop.f32.mrf.mxu0
    %v2770 = vadd.f32 %v518, %v2769
    %v2771 = vpop.f32.mrf.mxu0
    %v2772 = vadd.f32 %v522, %v2771
    %v2773 = vpop.f32.mrf.mxu0
    %v2774 = vpop.f32.mrf.mxu0
    %2775 = vdwg.mxu0
    %2776 = vmatprep.subr.bf16.mxu0 %v1816
    %2777 = vmatpush1.bf16.msra.mxu0 %v1815
    %2778 = vmatprep.subr.bf16.mxu0 %v1812
    %2779 = vmatpush1.bf16.msra.mxu0 %v1811
    %2780 = vmatprep.subr.bf16.mxu0 %v1808
    %2781 = vmatpush1.bf16.msra.mxu0 %v1807
    %2782 = vmatprep.subr.bf16.mxu0 %v1804
    %2783 = vmatpush1.bf16.msra.mxu0 %v1803
    %2784 = vmatprep.subr.bf16.mxu0 %v1800
    %2785 = vmatpush1.bf16.msra.mxu0 %v1799
    %2786 = vmatprep.subr.bf16.mxu0 %v1796
    %2787 = vmatpush1.bf16.msra.mxu0 %v1795
    %2788 = vmatprep.subr.bf16.mxu0 %v1792
    %2789 = vmatpush1.bf16.msra.mxu0 %v1791
    %2790 = vmatprep.subr.bf16.mxu0 %v1788
    %2791 = vmatpush1.bf16.msra.mxu0 %v1787
    %2792 = vmatprep.subr.bf16.mxu0 %v1848
    %2793 = vmatpush2.bf16.msra.mxu0 %v1847
    %2794 = vmatprep.subr.bf16.mxu0 %v1844
    %2795 = vmatpush2.bf16.msra.mxu0 %v1843
    %2796 = vmatprep.subr.bf16.mxu0 %v1840
    %2797 = vmatpush2.bf16.msra.mxu0 %v1839
    %2798 = vmatprep.subr.bf16.mxu0 %v1836
    %2799 = vmatpush2.bf16.msra.mxu0 %v1835
    %2800 = vmatprep.subr.bf16.mxu0 %v1832
    %2801 = vmatpush2.bf16.msra.mxu0 %v1831
    %2802 = vmatprep.subr.bf16.mxu0 %v1828
    %2803 = vmatpush2.bf16.msra.mxu0 %v1827
    %2804 = vmatprep.subr.bf16.mxu0 %v1824
    %2805 = vmatpush2.bf16.msra.mxu0 %v1823
    %2806 = vmatprep.subr.bf16.mxu0 %v1820
    %2807 = vmatpush2.bf16.msra.mxu0 %v1819
    %2808 = vmatprep.mubr.bf16.mxu0 %v548
    %2809 = vmatmul.mubr.bf16.gmra.mxu0 %v547
    %v2810 = vpop.f32.mrf.mxu0
    %v2811 = vadd.f32 %v2770, %v2810
    %v2812 = vpop.f32.mrf.mxu0
    %v2813 = vadd.f32 %v2772, %v2812
    %v2814 = vpop.f32.mrf.mxu0
    %v2815 = vpop.f32.mrf.mxu0
    %2816 = vdwg.mxu0
    %2817 = vmatprep.subr.bf16.mxu0 %v1880
    %2818 = vmatpush1.bf16.msra.mxu0 %v1879
    %2819 = vmatprep.subr.bf16.mxu0 %v1876
    %2820 = vmatpush1.bf16.msra.mxu0 %v1875
    %2821 = vmatprep.subr.bf16.mxu0 %v1872
    %2822 = vmatpush1.bf16.msra.mxu0 %v1871
    %2823 = vmatprep.subr.bf16.mxu0 %v1868
    %2824 = vmatpush1.bf16.msra.mxu0 %v1867
    %2825 = vmatprep.subr.bf16.mxu0 %v1864
    %2826 = vmatpush1.bf16.msra.mxu0 %v1863
    %2827 = vmatprep.subr.bf16.mxu0 %v1860
    %2828 = vmatpush1.bf16.msra.mxu0 %v1859
    %2829 = vmatprep.subr.bf16.mxu0 %v1856
    %2830 = vmatpush1.bf16.msra.mxu0 %v1855
    %2831 = vmatprep.subr.bf16.mxu0 %v1852
    %2832 = vmatpush1.bf16.msra.mxu0 %v1851
    %2833 = vmatprep.subr.bf16.mxu0 %v1912
    %2834 = vmatpush2.bf16.msra.mxu0 %v1911
    %2835 = vmatprep.subr.bf16.mxu0 %v1908
    %2836 = vmatpush2.bf16.msra.mxu0 %v1907
    %2837 = vmatprep.subr.bf16.mxu0 %v1904
    %2838 = vmatpush2.bf16.msra.mxu0 %v1903
    %2839 = vmatprep.subr.bf16.mxu0 %v1900
    %2840 = vmatpush2.bf16.msra.mxu0 %v1899
    %2841 = vmatprep.subr.bf16.mxu0 %v1896
    %2842 = vmatpush2.bf16.msra.mxu0 %v1895
    %2843 = vmatprep.subr.bf16.mxu0 %v1892
    %2844 = vmatpush2.bf16.msra.mxu0 %v1891
    %2845 = vmatprep.subr.bf16.mxu0 %v1888
    %2846 = vmatpush2.bf16.msra.mxu0 %v1887
    %2847 = vmatprep.subr.bf16.mxu0 %v1884
    %2848 = vmatpush2.bf16.msra.mxu0 %v1883
    %2849 = vmatprep.mubr.bf16.mxu0 %v550
    %2850 = vmatmul.mubr.bf16.gmra.mxu0 %v549
    %v2851 = vpop.f32.mrf.mxu0
    %v2852 = vadd.f32 %v2811, %v2851
    %v2853 = vpop.f32.mrf.mxu0
    %v2854 = vadd.f32 %v2813, %v2853
    %v2855 = vpop.f32.mrf.mxu0
    %v2856 = vpop.f32.mrf.mxu0
    %2857 = vdwg.mxu0
    %2858 = vmatprep.subr.bf16.mxu0 %v1944
    %2859 = vmatpush1.bf16.msra.mxu0 %v1943
    %2860 = vmatprep.subr.bf16.mxu0 %v1940
    %2861 = vmatpush1.bf16.msra.mxu0 %v1939
    %2862 = vmatprep.subr.bf16.mxu0 %v1936
    %2863 = vmatpush1.bf16.msra.mxu0 %v1935
    %2864 = vmatprep.subr.bf16.mxu0 %v1932
    %2865 = vmatpush1.bf16.msra.mxu0 %v1931
    %2866 = vmatprep.subr.bf16.mxu0 %v1928
    %2867 = vmatpush1.bf16.msra.mxu0 %v1927
    %2868 = vmatprep.subr.bf16.mxu0 %v1924
    %2869 = vmatpush1.bf16.msra.mxu0 %v1923
    %2870 = vmatprep.subr.bf16.mxu0 %v1920
    %2871 = vmatpush1.bf16.msra.mxu0 %v1919
    %2872 = vmatprep.subr.bf16.mxu0 %v1916
    %2873 = vmatpush1.bf16.msra.mxu0 %v1915
    %2874 = vmatprep.subr.bf16.mxu0 %v1976
    %2875 = vmatpush2.bf16.msra.mxu0 %v1975
    %2876 = vmatprep.subr.bf16.mxu0 %v1972
    %2877 = vmatpush2.bf16.msra.mxu0 %v1971
    %2878 = vmatprep.subr.bf16.mxu0 %v1968
    %2879 = vmatpush2.bf16.msra.mxu0 %v1967
    %2880 = vmatprep.subr.bf16.mxu0 %v1964
    %2881 = vmatpush2.bf16.msra.mxu0 %v1963
    %2882 = vmatprep.subr.bf16.mxu0 %v1960
    %2883 = vmatpush2.bf16.msra.mxu0 %v1959
    %2884 = vmatprep.subr.bf16.mxu0 %v1956
    %2885 = vmatpush2.bf16.msra.mxu0 %v1955
    %2886 = vmatprep.subr.bf16.mxu0 %v1952
    %2887 = vmatpush2.bf16.msra.mxu0 %v1951
    %2888 = vmatprep.subr.bf16.mxu0 %v1948
    %2889 = vmatpush2.bf16.msra.mxu0 %v1947
    %2890 = vmatprep.mubr.bf16.mxu0 %v552
    %2891 = vmatmul.mubr.bf16.gmra.mxu0 %v551
    %v2892 = vpop.f32.mrf.mxu0
    %v2893 = vadd.f32 %v2852, %v2892
    %v2894 = vpop.f32.mrf.mxu0
    %v2895 = vadd.f32 %v2854, %v2894
    %v2896 = vpop.f32.mrf.mxu0
    %v2897 = vpop.f32.mrf.mxu0
    %2898 = vdwg.mxu0
    %2899 = vmatprep.subr.bf16.mxu0 %v2008
    %2900 = vmatpush1.bf16.msra.mxu0 %v2007
    %2901 = vmatprep.subr.bf16.mxu0 %v2004
    %2902 = vmatpush1.bf16.msra.mxu0 %v2003
    %2903 = vmatprep.subr.bf16.mxu0 %v2000
    %2904 = vmatpush1.bf16.msra.mxu0 %v1999
    %2905 = vmatprep.subr.bf16.mxu0 %v1996
    %2906 = vmatpush1.bf16.msra.mxu0 %v1995
    %2907 = vmatprep.subr.bf16.mxu0 %v1992
    %2908 = vmatpush1.bf16.msra.mxu0 %v1991
    %2909 = vmatprep.subr.bf16.mxu0 %v1988
    %2910 = vmatpush1.bf16.msra.mxu0 %v1987
    %2911 = vmatprep.subr.bf16.mxu0 %v1984
    %2912 = vmatpush1.bf16.msra.mxu0 %v1983
    %2913 = vmatprep.subr.bf16.mxu0 %v1980
    %2914 = vmatpush1.bf16.msra.mxu0 %v1979
    %2915 = vmatprep.subr.bf16.mxu0 %v2040
    %2916 = vmatpush2.bf16.msra.mxu0 %v2039
    %2917 = vmatprep.subr.bf16.mxu0 %v2036
    %2918 = vmatpush2.bf16.msra.mxu0 %v2035
    %2919 = vmatprep.subr.bf16.mxu0 %v2032
    %2920 = vmatpush2.bf16.msra.mxu0 %v2031
    %2921 = vmatprep.subr.bf16.mxu0 %v2028
    %2922 = vmatpush2.bf16.msra.mxu0 %v2027
    %2923 = vmatprep.subr.bf16.mxu0 %v2024
    %2924 = vmatpush2.bf16.msra.mxu0 %v2023
    %2925 = vmatprep.subr.bf16.mxu0 %v2020
    %2926 = vmatpush2.bf16.msra.mxu0 %v2019
    %2927 = vmatprep.subr.bf16.mxu0 %v2016
    %2928 = vmatpush2.bf16.msra.mxu0 %v2015
    %2929 = vmatprep.subr.bf16.mxu0 %v2012
    %2930 = vmatpush2.bf16.msra.mxu0 %v2011
    %2931 = vmatprep.mubr.bf16.mxu0 %v554
    %2932 = vmatmul.mubr.bf16.gmra.mxu0 %v553
    %v2933 = vpop.f32.mrf.mxu0
    %v2934 = vadd.f32 %v2893, %v2933
    %v2935 = vpop.f32.mrf.mxu0
    %v2936 = vadd.f32 %v2895, %v2935
    %v2937 = vpop.f32.mrf.mxu0
    %v2938 = vpop.f32.mrf.mxu0
    %2939 = vdwg.mxu0
    %2940 = vmatprep.subr.bf16.mxu0 %v2072
    %2941 = vmatpush1.bf16.msra.mxu0 %v2071
    %2942 = vmatprep.subr.bf16.mxu0 %v2068
    %2943 = vmatpush1.bf16.msra.mxu0 %v2067
    %2944 = vmatprep.subr.bf16.mxu0 %v2064
    %2945 = vmatpush1.bf16.msra.mxu0 %v2063
    %2946 = vmatprep.subr.bf16.mxu0 %v2060
    %2947 = vmatpush1.bf16.msra.mxu0 %v2059
    %2948 = vmatprep.subr.bf16.mxu0 %v2056
    %2949 = vmatpush1.bf16.msra.mxu0 %v2055
    %2950 = vmatprep.subr.bf16.mxu0 %v2052
    %2951 = vmatpush1.bf16.msra.mxu0 %v2051
    %2952 = vmatprep.subr.bf16.mxu0 %v2048
    %2953 = vmatpush1.bf16.msra.mxu0 %v2047
    %2954 = vmatprep.subr.bf16.mxu0 %v2044
    %2955 = vmatpush1.bf16.msra.mxu0 %v2043
    %2956 = vmatprep.subr.bf16.mxu0 %v2104
    %2957 = vmatpush2.bf16.msra.mxu0 %v2103
    %2958 = vmatprep.subr.bf16.mxu0 %v2100
    %2959 = vmatpush2.bf16.msra.mxu0 %v2099
    %2960 = vmatprep.subr.bf16.mxu0 %v2096
    %2961 = vmatpush2.bf16.msra.mxu0 %v2095
    %2962 = vmatprep.subr.bf16.mxu0 %v2092
    %2963 = vmatpush2.bf16.msra.mxu0 %v2091
    %2964 = vmatprep.subr.bf16.mxu0 %v2088
    %2965 = vmatpush2.bf16.msra.mxu0 %v2087
    %2966 = vmatprep.subr.bf16.mxu0 %v2084
    %2967 = vmatpush2.bf16.msra.mxu0 %v2083
    %2968 = vmatprep.subr.bf16.mxu0 %v2080
    %2969 = vmatpush2.bf16.msra.mxu0 %v2079
    %2970 = vmatprep.subr.bf16.mxu0 %v2076
    %2971 = vmatpush2.bf16.msra.mxu0 %v2075
    %2972 = vmatprep.mubr.bf16.mxu0 %v556
    %2973 = vmatmul.mubr.bf16.gmra.mxu0 %v555
    %v2974 = vpop.f32.mrf.mxu0
    %v2975 = vadd.f32 %v2934, %v2974
    %v2976 = vpop.f32.mrf.mxu0
    %v2977 = vadd.f32 %v2936, %v2976
    %v2978 = vpop.f32.mrf.mxu0
    %v2979 = vpop.f32.mrf.mxu0
    %2980 = vdwg.mxu0
    %v2981 = vmax.f32 %v2729, 0.0
    %v2982 = vmax.f32 %v2731, 0.0
    %v2983 = vmax.f32 %v2975, 0.0
    %v2984 = vmax.f32 %v2977, 0.0
    %v2985 = vpack.c.bf16 %v2981, %v2981
    %v2986 = vpack.c.bf16 %v2982, %v2982
    %v2987 = vpack.c.bf16 %v2983, %v2983
    %v2988 = vpack.c.bf16 %v2984, %v2984
    %v2989 = vld [vmem:[#allocation8] sm:$0xff]
    %v2990 = vld [vmem:[#allocation8 + $0x8] sm:$0xff]
    %v2991 = vld [vmem:[#allocation8 + $0x10] sm:$0xff]
    %v2992 = vld [vmem:[#allocation8 + $0x18] sm:$0xff]
    %v2993 = vld [vmem:[#allocation8 + $0x20] sm:$0xff]
    %v2994 = vld [vmem:[#allocation8 + $0x28] sm:$0xff]
    %v2995 = vld [vmem:[#allocation8 + $0x30] sm:$0xff]
    %v2996 = vld [vmem:[#allocation8 + $0x38] sm:$0xff]
    %v2997 = vld [vmem:[#allocation8 + $0x40] sm:$0xff]
    %v2998 = vld [vmem:[#allocation8 + $0x48] sm:$0xff]
    %v2999 = vld [vmem:[#allocation8 + $0x50] sm:$0xff]
    %v3000 = vld [vmem:[#allocation8 + $0x58] sm:$0xff]
    %v3001 = vld [vmem:[#allocation8 + $0x60] sm:$0xff]
    %v3002 = vld [vmem:[#allocation8 + $0x68] sm:$0xff]
    %v3003 = vld [vmem:[#allocation8 + $0x70] sm:$0xff]
    %v3004 = vld [vmem:[#allocation8 + $0x78] sm:$0xff]
    %v3005 = vld [vmem:[#allocation8 + $0x80] sm:$0xff]
    %v3006 = vld [vmem:[#allocation8 + $0x88] sm:$0xff]
    %v3007 = vld [vmem:[#allocation8 + $0x90] sm:$0xff]
    %v3008 = vld [vmem:[#allocation8 + $0x98] sm:$0xff]
    %v3009 = vld [vmem:[#allocation8 + $0xa0] sm:$0xff]
    %v3010 = vld [vmem:[#allocation8 + $0xa8] sm:$0xff]
    %v3011 = vld [vmem:[#allocation8 + $0xb0] sm:$0xff]
    %v3012 = vld [vmem:[#allocation8 + $0xb8] sm:$0xff]
    %v3013 = vld [vmem:[#allocation8 + $0xc0] sm:$0xff]
    %v3014 = vld [vmem:[#allocation8 + $0xc8] sm:$0xff]
    %v3015 = vld [vmem:[#allocation8 + $0xd0] sm:$0xff]
    %v3016 = vld [vmem:[#allocation8 + $0xd8] sm:$0xff]
    %v3017 = vld [vmem:[#allocation8 + $0xe0] sm:$0xff]
    %v3018 = vld [vmem:[#allocation8 + $0xe8] sm:$0xff]
    %v3019 = vld [vmem:[#allocation8 + $0xf0] sm:$0xff]
    %v3020 = vld [vmem:[#allocation8 + $0xf8] sm:$0xff]
    %v3021 = vld [vmem:[#allocation8 + $0x100] sm:$0xff]
    %v3022 = vld [vmem:[#allocation8 + $0x108] sm:$0xff]
    %v3023 = vld [vmem:[#allocation8 + $0x110] sm:$0xff]
    %v3024 = vld [vmem:[#allocation8 + $0x118] sm:$0xff]
    %v3025 = vld [vmem:[#allocation8 + $0x120] sm:$0xff]
    %v3026 = vld [vmem:[#allocation8 + $0x128] sm:$0xff]
    %v3027 = vld [vmem:[#allocation8 + $0x130] sm:$0xff]
    %v3028 = vld [vmem:[#allocation8 + $0x138] sm:$0xff]
    %v3029 = vld [vmem:[#allocation8 + $0x140] sm:$0xff]
    %v3030 = vld [vmem:[#allocation8 + $0x148] sm:$0xff]
    %v3031 = vld [vmem:[#allocation8 + $0x150] sm:$0xff]
    %v3032 = vld [vmem:[#allocation8 + $0x158] sm:$0xff]
    %v3033 = vld [vmem:[#allocation8 + $0x160] sm:$0xff]
    %v3034 = vld [vmem:[#allocation8 + $0x168] sm:$0xff]
    %v3035 = vld [vmem:[#allocation8 + $0x170] sm:$0xff]
    %v3036 = vld [vmem:[#allocation8 + $0x178] sm:$0xff]
    %v3037 = vld [vmem:[#allocation8 + $0x180] sm:$0xff]
    %v3038 = vld [vmem:[#allocation8 + $0x188] sm:$0xff]
    %v3039 = vld [vmem:[#allocation8 + $0x190] sm:$0xff]
    %v3040 = vld [vmem:[#allocation8 + $0x198] sm:$0xff]
    %v3041 = vld [vmem:[#allocation8 + $0x1a0] sm:$0xff]
    %v3042 = vld [vmem:[#allocation8 + $0x1a8] sm:$0xff]
    %v3043 = vld [vmem:[#allocation8 + $0x1b0] sm:$0xff]
    %v3044 = vld [vmem:[#allocation8 + $0x1b8] sm:$0xff]
    %v3045 = vld [vmem:[#allocation8 + $0x1c0] sm:$0xff]
    %v3046 = vld [vmem:[#allocation8 + $0x1c8] sm:$0xff]
    %v3047 = vld [vmem:[#allocation8 + $0x1d0] sm:$0xff]
    %v3048 = vld [vmem:[#allocation8 + $0x1d8] sm:$0xff]
    %v3049 = vld [vmem:[#allocation8 + $0x1e0] sm:$0xff]
    %v3050 = vld [vmem:[#allocation8 + $0x1e8] sm:$0xff]
    %v3051 = vld [vmem:[#allocation8 + $0x1f0] sm:$0xff]
    %v3052 = vld [vmem:[#allocation8 + $0x1f8] sm:$0xff]
    %v3053 = vld [vmem:[#allocation10] sm:$0x3]
    %v3055 = vlaneseq
    %v3056 = vshrl.u32 %v3055, 7
    %v3057 = vsub.s32 0, %v3056
    %v3058 = vrot.slane %v3053, %v3057
    %v3059 = vlaneseq
    %v3060 = vshrl.u32 %v3059, 7
    %v3061 = vsub.s32 1, %v3060
    %v3062 = vrot.slane %v3053, %v3061
    %v3129 = vunpack.c.l.b16 %v2989
    %v3130 = vunpack.c.h.b16 %v2989
    %v3131 = vunpack.c.l.b16 %v2990
    %v3132 = vunpack.c.h.b16 %v2990
    %v3133 = vunpack.c.l.b16 %v2991
    %v3134 = vunpack.c.h.b16 %v2991
    %v3135 = vunpack.c.l.b16 %v2992
    %v3136 = vunpack.c.h.b16 %v2992
    %v3137 = vunpack.c.l.b16 %v2993
    %v3138 = vunpack.c.h.b16 %v2993
    %v3139 = vunpack.c.l.b16 %v2994
    %v3140 = vunpack.c.h.b16 %v2994
    %v3141 = vunpack.c.l.b16 %v2995
    %v3142 = vunpack.c.h.b16 %v2995
    %v3143 = vunpack.c.l.b16 %v2996
    %v3144 = vunpack.c.h.b16 %v2996
    %v3145 = vunpack.c.l.b16 %v2997
    %v3146 = vunpack.c.h.b16 %v2997
    %v3147 = vunpack.c.l.b16 %v2998
    %v3148 = vunpack.c.h.b16 %v2998
    %v3149 = vunpack.c.l.b16 %v2999
    %v3150 = vunpack.c.h.b16 %v2999
    %v3151 = vunpack.c.l.b16 %v3000
    %v3152 = vunpack.c.h.b16 %v3000
    %v3153 = vunpack.c.l.b16 %v3001
    %v3154 = vunpack.c.h.b16 %v3001
    %v3155 = vunpack.c.l.b16 %v3002
    %v3156 = vunpack.c.h.b16 %v3002
    %v3157 = vunpack.c.l.b16 %v3003
    %v3158 = vunpack.c.h.b16 %v3003
    %v3159 = vunpack.c.l.b16 %v3004
    %v3160 = vunpack.c.h.b16 %v3004
    %v3161 = vunpack.c.l.b16 %v3005
    %v3162 = vunpack.c.h.b16 %v3005
    %v3163 = vunpack.c.l.b16 %v3006
    %v3164 = vunpack.c.h.b16 %v3006
    %v3165 = vunpack.c.l.b16 %v3007
    %v3166 = vunpack.c.h.b16 %v3007
    %v3167 = vunpack.c.l.b16 %v3008
    %v3168 = vunpack.c.h.b16 %v3008
    %v3169 = vunpack.c.l.b16 %v3009
    %v3170 = vunpack.c.h.b16 %v3009
    %v3171 = vunpack.c.l.b16 %v3010
    %v3172 = vunpack.c.h.b16 %v3010
    %v3173 = vunpack.c.l.b16 %v3011
    %v3174 = vunpack.c.h.b16 %v3011
    %v3175 = vunpack.c.l.b16 %v3012
    %v3176 = vunpack.c.h.b16 %v3012
    %v3177 = vunpack.c.l.b16 %v3013
    %v3178 = vunpack.c.h.b16 %v3013
    %v3179 = vunpack.c.l.b16 %v3014
    %v3180 = vunpack.c.h.b16 %v3014
    %v3181 = vunpack.c.l.b16 %v3015
    %v3182 = vunpack.c.h.b16 %v3015
    %v3183 = vunpack.c.l.b16 %v3016
    %v3184 = vunpack.c.h.b16 %v3016
    %v3185 = vunpack.c.l.b16 %v3017
    %v3186 = vunpack.c.h.b16 %v3017
    %v3187 = vunpack.c.l.b16 %v3018
    %v3188 = vunpack.c.h.b16 %v3018
    %v3189 = vunpack.c.l.b16 %v3019
    %v3190 = vunpack.c.h.b16 %v3019
    %v3191 = vunpack.c.l.b16 %v3020
    %v3192 = vunpack.c.h.b16 %v3020
    %v3193 = vunpack.c.l.b16 %v3021
    %v3194 = vunpack.c.h.b16 %v3021
    %v3195 = vunpack.c.l.b16 %v3022
    %v3196 = vunpack.c.h.b16 %v3022
    %v3197 = vunpack.c.l.b16 %v3023
    %v3198 = vunpack.c.h.b16 %v3023
    %v3199 = vunpack.c.l.b16 %v3024
    %v3200 = vunpack.c.h.b16 %v3024
    %v3201 = vunpack.c.l.b16 %v3025
    %v3202 = vunpack.c.h.b16 %v3025
    %v3203 = vunpack.c.l.b16 %v3026
    %v3204 = vunpack.c.h.b16 %v3026
    %v3205 = vunpack.c.l.b16 %v3027
    %v3206 = vunpack.c.h.b16 %v3027
    %v3207 = vunpack.c.l.b16 %v3028
    %v3208 = vunpack.c.h.b16 %v3028
    %v3209 = vunpack.c.l.b16 %v3029
    %v3210 = vunpack.c.h.b16 %v3029
    %v3211 = vunpack.c.l.b16 %v3030
    %v3212 = vunpack.c.h.b16 %v3030
    %v3213 = vunpack.c.l.b16 %v3031
    %v3214 = vunpack.c.h.b16 %v3031
    %v3215 = vunpack.c.l.b16 %v3032
    %v3216 = vunpack.c.h.b16 %v3032
    %v3217 = vunpack.c.l.b16 %v3033
    %v3218 = vunpack.c.h.b16 %v3033
    %v3219 = vunpack.c.l.b16 %v3034
    %v3220 = vunpack.c.h.b16 %v3034
    %v3221 = vunpack.c.l.b16 %v3035
    %v3222 = vunpack.c.h.b16 %v3035
    %v3223 = vunpack.c.l.b16 %v3036
    %v3224 = vunpack.c.h.b16 %v3036
    %v3225 = vunpack.c.l.b16 %v3037
    %v3226 = vunpack.c.h.b16 %v3037
    %v3227 = vunpack.c.l.b16 %v3038
    %v3228 = vunpack.c.h.b16 %v3038
    %v3229 = vunpack.c.l.b16 %v3039
    %v3230 = vunpack.c.h.b16 %v3039
    %v3231 = vunpack.c.l.b16 %v3040
    %v3232 = vunpack.c.h.b16 %v3040
    %v3233 = vunpack.c.l.b16 %v3041
    %v3234 = vunpack.c.h.b16 %v3041
    %v3235 = vunpack.c.l.b16 %v3042
    %v3236 = vunpack.c.h.b16 %v3042
    %v3237 = vunpack.c.l.b16 %v3043
    %v3238 = vunpack.c.h.b16 %v3043
    %v3239 = vunpack.c.l.b16 %v3044
    %v3240 = vunpack.c.h.b16 %v3044
    %v3241 = vunpack.c.l.b16 %v3045
    %v3242 = vunpack.c.h.b16 %v3045
    %v3243 = vunpack.c.l.b16 %v3046
    %v3244 = vunpack.c.h.b16 %v3046
    %v3245 = vunpack.c.l.b16 %v3047
    %v3246 = vunpack.c.h.b16 %v3047
    %v3247 = vunpack.c.l.b16 %v3048
    %v3248 = vunpack.c.h.b16 %v3048
    %v3249 = vunpack.c.l.b16 %v3049
    %v3250 = vunpack.c.h.b16 %v3049
    %v3251 = vunpack.c.l.b16 %v3050
    %v3252 = vunpack.c.h.b16 %v3050
    %v3253 = vunpack.c.l.b16 %v3051
    %v3254 = vunpack.c.h.b16 %v3051
    %v3255 = vunpack.c.l.b16 %v3052
    %v3256 = vunpack.c.h.b16 %v3052
    %v3257 = vpack.c.b16 %v3131, %v3129
    %v3258 = vpack.c.b16 %v3132, %v3130
    %v3259 = vpack.c.b16 %v3135, %v3133
    %v3260 = vpack.c.b16 %v3136, %v3134
    %v3261 = vpack.c.b16 %v3139, %v3137
    %v3262 = vpack.c.b16 %v3140, %v3138
    %v3263 = vpack.c.b16 %v3143, %v3141
    %v3264 = vpack.c.b16 %v3144, %v3142
    %v3265 = vpack.c.b16 %v3147, %v3145
    %v3266 = vpack.c.b16 %v3148, %v3146
    %v3267 = vpack.c.b16 %v3151, %v3149
    %v3268 = vpack.c.b16 %v3152, %v3150
    %v3269 = vpack.c.b16 %v3155, %v3153
    %v3270 = vpack.c.b16 %v3156, %v3154
    %v3271 = vpack.c.b16 %v3159, %v3157
    %v3272 = vpack.c.b16 %v3160, %v3158
    %v3273 = vpack.c.b16 %v3163, %v3161
    %v3274 = vpack.c.b16 %v3164, %v3162
    %v3275 = vpack.c.b16 %v3167, %v3165
    %v3276 = vpack.c.b16 %v3168, %v3166
    %v3277 = vpack.c.b16 %v3171, %v3169
    %v3278 = vpack.c.b16 %v3172, %v3170
    %v3279 = vpack.c.b16 %v3175, %v3173
    %v3280 = vpack.c.b16 %v3176, %v3174
    %v3281 = vpack.c.b16 %v3179, %v3177
    %v3282 = vpack.c.b16 %v3180, %v3178
    %v3283 = vpack.c.b16 %v3183, %v3181
    %v3284 = vpack.c.b16 %v3184, %v3182
    %v3285 = vpack.c.b16 %v3187, %v3185
    %v3286 = vpack.c.b16 %v3188, %v3186
    %v3287 = vpack.c.b16 %v3191, %v3189
    %v3288 = vpack.c.b16 %v3192, %v3190
    %v3289 = vpack.c.b16 %v3195, %v3193
    %v3290 = vpack.c.b16 %v3196, %v3194
    %v3291 = vpack.c.b16 %v3199, %v3197
    %v3292 = vpack.c.b16 %v3200, %v3198
    %v3293 = vpack.c.b16 %v3203, %v3201
    %v3294 = vpack.c.b16 %v3204, %v3202
    %v3295 = vpack.c.b16 %v3207, %v3205
    %v3296 = vpack.c.b16 %v3208, %v3206
    %v3297 = vpack.c.b16 %v3211, %v3209
    %v3298 = vpack.c.b16 %v3212, %v3210
    %v3299 = vpack.c.b16 %v3215, %v3213
    %v3300 = vpack.c.b16 %v3216, %v3214
    %v3301 = vpack.c.b16 %v3219, %v3217
    %v3302 = vpack.c.b16 %v3220, %v3218
    %v3303 = vpack.c.b16 %v3223, %v3221
    %v3304 = vpack.c.b16 %v3224, %v3222
    %v3305 = vpack.c.b16 %v3227, %v3225
    %v3306 = vpack.c.b16 %v3228, %v3226
    %v3307 = vpack.c.b16 %v3231, %v3229
    %v3308 = vpack.c.b16 %v3232, %v3230
    %v3309 = vpack.c.b16 %v3235, %v3233
    %v3310 = vpack.c.b16 %v3236, %v3234
    %v3311 = vpack.c.b16 %v3239, %v3237
    %v3312 = vpack.c.b16 %v3240, %v3238
    %v3313 = vpack.c.b16 %v3243, %v3241
    %v3314 = vpack.c.b16 %v3244, %v3242
    %v3315 = vpack.c.b16 %v3247, %v3245
    %v3316 = vpack.c.b16 %v3248, %v3246
    %v3317 = vpack.c.b16 %v3251, %v3249
    %v3318 = vpack.c.b16 %v3252, %v3250
    %v3319 = vpack.c.b16 %v3255, %v3253
    %v3320 = vpack.c.b16 %v3256, %v3254
    %3385 = vmatprep.subr.bf16.mxu0 %v3272
    %3386 = vmatpush1.bf16.msra.mxu0 %v3271
    %3387 = vmatprep.subr.bf16.mxu0 %v3270
    %3388 = vmatpush1.bf16.msra.mxu0 %v3269
    %3389 = vmatprep.subr.bf16.mxu0 %v3268
    %3390 = vmatpush1.bf16.msra.mxu0 %v3267
    %3391 = vmatprep.subr.bf16.mxu0 %v3266
    %3392 = vmatpush1.bf16.msra.mxu0 %v3265
    %3393 = vmatprep.subr.bf16.mxu0 %v3264
    %3394 = vmatpush1.bf16.msra.mxu0 %v3263
    %3395 = vmatprep.subr.bf16.mxu0 %v3262
    %3396 = vmatpush1.bf16.msra.mxu0 %v3261
    %3397 = vmatprep.subr.bf16.mxu0 %v3260
    %3398 = vmatpush1.bf16.msra.mxu0 %v3259
    %3399 = vmatprep.subr.bf16.mxu0 %v3258
    %3400 = vmatpush1.bf16.msra.mxu0 %v3257
    %3401 = vmatprep.subr.bf16.mxu0 %v3288
    %3402 = vmatpush2.bf16.msra.mxu0 %v3287
    %3403 = vmatprep.subr.bf16.mxu0 %v3286
    %3404 = vmatpush2.bf16.msra.mxu0 %v3285
    %3405 = vmatprep.subr.bf16.mxu0 %v3284
    %3406 = vmatpush2.bf16.msra.mxu0 %v3283
    %3407 = vmatprep.subr.bf16.mxu0 %v3282
    %3408 = vmatpush2.bf16.msra.mxu0 %v3281
    %3409 = vmatprep.subr.bf16.mxu0 %v3280
    %3410 = vmatpush2.bf16.msra.mxu0 %v3279
    %3411 = vmatprep.subr.bf16.mxu0 %v3278
    %3412 = vmatpush2.bf16.msra.mxu0 %v3277
    %3413 = vmatprep.subr.bf16.mxu0 %v3276
    %3414 = vmatpush2.bf16.msra.mxu0 %v3275
    %3415 = vmatprep.subr.bf16.mxu0 %v3274
    %3416 = vmatpush2.bf16.msra.mxu0 %v3273
    %3417 = vmatprep.mubr.bf16.mxu0 %v2986
    %3418 = vmatmul.mubr.bf16.gmra.mxu0 %v2985
    %v3419 = vpop.f32.mrf.mxu0
    %v3420 = vadd.f32 %v3058, %v3419
    %v3421 = vpop.f32.mrf.mxu0
    %v3422 = vadd.f32 %v3062, %v3421
    %v3423 = vpop.f32.mrf.mxu0
    %v3424 = vpop.f32.mrf.mxu0
    %3425 = vdwg.mxu0
    %3426 = vmatprep.subr.bf16.mxu0 %v3304
    %3427 = vmatpush1.bf16.msra.mxu0 %v3303
    %3428 = vmatprep.subr.bf16.mxu0 %v3302
    %3429 = vmatpush1.bf16.msra.mxu0 %v3301
    %3430 = vmatprep.subr.bf16.mxu0 %v3300
    %3431 = vmatpush1.bf16.msra.mxu0 %v3299
    %3432 = vmatprep.subr.bf16.mxu0 %v3298
    %3433 = vmatpush1.bf16.msra.mxu0 %v3297
    %3434 = vmatprep.subr.bf16.mxu0 %v3296
    %3435 = vmatpush1.bf16.msra.mxu0 %v3295
    %3436 = vmatprep.subr.bf16.mxu0 %v3294
    %3437 = vmatpush1.bf16.msra.mxu0 %v3293
    %3438 = vmatprep.subr.bf16.mxu0 %v3292
    %3439 = vmatpush1.bf16.msra.mxu0 %v3291
    %3440 = vmatprep.subr.bf16.mxu0 %v3290
    %3441 = vmatpush1.bf16.msra.mxu0 %v3289
    %3442 = vmatprep.subr.bf16.mxu0 %v3320
    %3443 = vmatpush2.bf16.msra.mxu0 %v3319
    %3444 = vmatprep.subr.bf16.mxu0 %v3318
    %3445 = vmatpush2.bf16.msra.mxu0 %v3317
    %3446 = vmatprep.subr.bf16.mxu0 %v3316
    %3447 = vmatpush2.bf16.msra.mxu0 %v3315
    %3448 = vmatprep.subr.bf16.mxu0 %v3314
    %3449 = vmatpush2.bf16.msra.mxu0 %v3313
    %3450 = vmatprep.subr.bf16.mxu0 %v3312
    %3451 = vmatpush2.bf16.msra.mxu0 %v3311
    %3452 = vmatprep.subr.bf16.mxu0 %v3310
    %3453 = vmatpush2.bf16.msra.mxu0 %v3309
    %3454 = vmatprep.subr.bf16.mxu0 %v3308
    %3455 = vmatpush2.bf16.msra.mxu0 %v3307
    %3456 = vmatprep.subr.bf16.mxu0 %v3306
    %3457 = vmatpush2.bf16.msra.mxu0 %v3305
    %3458 = vmatprep.mubr.bf16.mxu0 %v2988
    %3459 = vmatmul.mubr.bf16.gmra.mxu0 %v2987
    %v3460 = vpop.f32.mrf.mxu0
    %v3461 = vadd.f32 %v3420, %v3460
    %v3462 = vpop.f32.mrf.mxu0
    %v3463 = vadd.f32 %v3422, %v3462
    %v3464 = vpop.f32.mrf.mxu0
    %v3465 = vpop.f32.mrf.mxu0
    %3466 = vdwg.mxu0
    %v3467 = vmax.f32 %v3461, 0.0
    %v3468 = vmax.f32 %v3463, 0.0
    %v3469 = vpack.c.bf16 %v3467, %v3467
    %v3470 = vpack.c.bf16 %v3468, %v3468
    %v3471 = vld [vmem:[#allocation11] sm:$0xf]
    %v3472 = vld [vmem:[#allocation11 + $0x4] sm:$0xf]
    %v3473 = vld [vmem:[#allocation11 + $0x8] sm:$0xf]
    %v3474 = vld [vmem:[#allocation11 + $0xc] sm:$0xf]
    %v3475 = vld [vmem:[#allocation11 + $0x10] sm:$0xf]
    %v3476 = vld [vmem:[#allocation11 + $0x14] sm:$0xf]
    %v3477 = vld [vmem:[#allocation11 + $0x18] sm:$0xf]
    %v3478 = vld [vmem:[#allocation11 + $0x1c] sm:$0xf]
    %v3479 = vld [vmem:[#allocation11 + $0x20] sm:$0xf]
    %v3480 = vld [vmem:[#allocation11 + $0x24] sm:$0xf]
    %v3481 = vld [vmem:[#allocation11 + $0x28] sm:$0xf]
    %v3482 = vld [vmem:[#allocation11 + $0x2c] sm:$0xf]
    %v3483 = vld [vmem:[#allocation11 + $0x30] sm:$0xf]
    %v3484 = vld [vmem:[#allocation11 + $0x34] sm:$0xf]
    %v3485 = vld [vmem:[#allocation11 + $0x38] sm:$0xf]
    %v3486 = vld [vmem:[#allocation11 + $0x3c] sm:$0xf]
    %v3487 = vld [vmem:[#allocation11 + $0x40] sm:$0xf]
    %v3488 = vld [vmem:[#allocation11 + $0x44] sm:$0xf]
    %v3489 = vld [vmem:[#allocation11 + $0x48] sm:$0xf]
    %v3490 = vld [vmem:[#allocation11 + $0x4c] sm:$0xf]
    %v3491 = vld [vmem:[#allocation11 + $0x50] sm:$0xf]
    %v3492 = vld [vmem:[#allocation11 + $0x54] sm:$0xf]
    %v3493 = vld [vmem:[#allocation11 + $0x58] sm:$0xf]
    %v3494 = vld [vmem:[#allocation11 + $0x5c] sm:$0xf]
    %v3495 = vld [vmem:[#allocation11 + $0x60] sm:$0xf]
    %v3496 = vld [vmem:[#allocation11 + $0x64] sm:$0xf]
    %v3497 = vld [vmem:[#allocation11 + $0x68] sm:$0xf]
    %v3498 = vld [vmem:[#allocation11 + $0x6c] sm:$0xf]
    %v3499 = vld [vmem:[#allocation11 + $0x70] sm:$0xf]
    %v3500 = vld [vmem:[#allocation11 + $0x74] sm:$0xf]
    %v3501 = vld [vmem:[#allocation11 + $0x78] sm:$0xf]
    %v3502 = vld [vmem:[#allocation11 + $0x7c] sm:$0xf]
    %v3503 = vld [vmem:[#allocation13] sm:$0x1]
    %v3505 = vlaneseq
    %v3506 = vshrl.u32 %v3505, 7
    %v3507 = vsub.s32 0, %v3506
    %v3508 = vrot.slane %v3503, %v3507
    %v3542 = vunpack.c.l.b16 %v3471
    %v3543 = vunpack.c.l.b16 %v3472
    %v3544 = vunpack.c.l.b16 %v3473
    %v3545 = vunpack.c.l.b16 %v3474
    %v3546 = vunpack.c.l.b16 %v3475
    %v3547 = vunpack.c.l.b16 %v3476
    %v3548 = vunpack.c.l.b16 %v3477
    %v3549 = vunpack.c.l.b16 %v3478
    %v3550 = vunpack.c.l.b16 %v3479
    %v3551 = vunpack.c.l.b16 %v3480
    %v3552 = vunpack.c.l.b16 %v3481
    %v3553 = vunpack.c.l.b16 %v3482
    %v3554 = vunpack.c.l.b16 %v3483
    %v3555 = vunpack.c.l.b16 %v3484
    %v3556 = vunpack.c.l.b16 %v3485
    %v3557 = vunpack.c.l.b16 %v3486
    %v3558 = vunpack.c.l.b16 %v3487
    %v3559 = vunpack.c.l.b16 %v3488
    %v3560 = vunpack.c.l.b16 %v3489
    %v3561 = vunpack.c.l.b16 %v3490
    %v3562 = vunpack.c.l.b16 %v3491
    %v3563 = vunpack.c.l.b16 %v3492
    %v3564 = vunpack.c.l.b16 %v3493
    %v3565 = vunpack.c.l.b16 %v3494
    %v3566 = vunpack.c.l.b16 %v3495
    %v3567 = vunpack.c.l.b16 %v3496
    %v3568 = vunpack.c.l.b16 %v3497
    %v3569 = vunpack.c.l.b16 %v3498
    %v3570 = vunpack.c.l.b16 %v3499
    %v3571 = vunpack.c.l.b16 %v3500
    %v3572 = vunpack.c.l.b16 %v3501
    %v3573 = vunpack.c.l.b16 %v3502
    %v3574 = vpack.c.b16 %v3543, %v3542
    %v3575 = vpack.c.b16 %v3545, %v3544
    %v3576 = vpack.c.b16 %v3547, %v3546
    %v3577 = vpack.c.b16 %v3549, %v3548
    %v3578 = vpack.c.b16 %v3551, %v3550
    %v3579 = vpack.c.b16 %v3553, %v3552
    %v3580 = vpack.c.b16 %v3555, %v3554
    %v3581 = vpack.c.b16 %v3557, %v3556
    %v3582 = vpack.c.b16 %v3559, %v3558
    %v3583 = vpack.c.b16 %v3561, %v3560
    %v3584 = vpack.c.b16 %v3563, %v3562
    %v3585 = vpack.c.b16 %v3565, %v3564
    %v3586 = vpack.c.b16 %v3567, %v3566
    %v3587 = vpack.c.b16 %v3569, %v3568
    %v3588 = vpack.c.b16 %v3571, %v3570
    %v3589 = vpack.c.b16 %v3573, %v3572
    %3606 = vmatprep.subr.bf16.mxu0 0
    %3607 = vmatpush1.bf16.msra.mxu0 %v3581
    %3608 = vmatprep.subr.bf16.mxu0 0
    %3609 = vmatpush1.bf16.msra.mxu0 %v3580
    %3610 = vmatprep.subr.bf16.mxu0 0
    %3611 = vmatpush1.bf16.msra.mxu0 %v3579
    %3612 = vmatprep.subr.bf16.mxu0 0
    %3613 = vmatpush1.bf16.msra.mxu0 %v3578
    %3614 = vmatprep.subr.bf16.mxu0 0
    %3615 = vmatpush1.bf16.msra.mxu0 %v3577
    %3616 = vmatprep.subr.bf16.mxu0 0
    %3617 = vmatpush1.bf16.msra.mxu0 %v3576
    %3618 = vmatprep.subr.bf16.mxu0 0
    %3619 = vmatpush1.bf16.msra.mxu0 %v3575
    %3620 = vmatprep.subr.bf16.mxu0 0
    %3621 = vmatpush1.bf16.msra.mxu0 %v3574
    %3622 = vmatprep.subr.bf16.mxu0 0
    %3623 = vmatpush2.bf16.msra.mxu0 %v3589
    %3624 = vmatprep.subr.bf16.mxu0 0
    %3625 = vmatpush2.bf16.msra.mxu0 %v3588
    %3626 = vmatprep.subr.bf16.mxu0 0
    %3627 = vmatpush2.bf16.msra.mxu0 %v3587
    %3628 = vmatprep.subr.bf16.mxu0 0
    %3629 = vmatpush2.bf16.msra.mxu0 %v3586
    %3630 = vmatprep.subr.bf16.mxu0 0
    %3631 = vmatpush2.bf16.msra.mxu0 %v3585
    %3632 = vmatprep.subr.bf16.mxu0 0
    %3633 = vmatpush2.bf16.msra.mxu0 %v3584
    %3634 = vmatprep.subr.bf16.mxu0 0
    %3635 = vmatpush2.bf16.msra.mxu0 %v3583
    %3636 = vmatprep.subr.bf16.mxu0 0
    %3637 = vmatpush2.bf16.msra.mxu0 %v3582
    %3638 = vmatprep.mubr.bf16.mxu0 %v3470
    %3639 = vmatmul.mubr.bf16.gmra.mxu0 %v3469
    %v3640 = vpop.f32.mrf.mxu0
    %v3641 = vadd.f32 %v3508, %v3640
    %v3642 = vpop.f32.mrf.mxu0
    %v3643 = vpop.f32.mrf.mxu0
    %v3644 = vpop.f32.mrf.mxu0
    %3645 = vdwg.mxu0
    %3646 = vst [vmem:[#allocation14] sm:$0xff] %v3641
    // Predicated region
    $region58: #{tpu_custom_call.1} parent=1 // pred_check
      _
    $region59: #{tpu_custom_call.1} parent=1 // pred_check_branch
      %3648 = sbr.rel (0) target = $region61
    $region60: #{tpu_custom_call.1} parent=1 // pred_region
      %s3650 = ssub.s32 128, 128
      %3651 = vsyncadd [#allocation4], %s3650
      %s3653 = sshll.u32 [#allocation14], 4
      %s3654 = int_to_ptr.vmem [resolvable:$true] %s3653
      %3656 = dma.vmem_to_hbm [thread:$0]  %s3654, 128, %s7, [#allocation4]
    $region61: #{tpu_custom_call.1} parent=1 // pred_fallthru
      _
    // Predicated region
    $region62: #{tpu_custom_call.1} parent=1 // pred_check
      _
    $region63: #{tpu_custom_call.1} parent=1 // pred_check_branch
      %3658 = sbr.rel (0) target = $region65
    $region64: #{tpu_custom_call.1} parent=1 // pred_region
      %3659 = dma.done [#allocation4], 128
    $region65: #{tpu_custom_call.1} parent=1 // pred_fallthru
      _
    %3660 = vsyncpa [#allocation3], 1
    %3661 = vsyncpa [#allocation6], 1
    %3662 = vsyncpa [#allocation9], 1
    %3663 = vsyncpa [#allocation12], 1
    %3664 = vsyncpa [#allocation4], 1

</llo_original>
